<compile_context>
chip_gen: v5e
topology: v5e:2x2
jax: 0.10.0
libtpu: 0.0.40
codegen_flags: <defaults>
</compile_context>

<pallas_src>
import numpy as np
import jax
import jax.numpy as jnp
from jax.experimental import pallas as pl
from jax.experimental.pallas import tpu as pltpu


# ----------------------------------------------------------------------------
# graph support (filter_type='laplacian' -> one scaled-laplacian support)
# ----------------------------------------------------------------------------
def calculate_scaled_laplacian(adj_mx):
    adj = np.asarray(adj_mx, dtype=np.float64)
    adj = np.maximum(adj, adj.T)
    n = adj.shape[0]
    d = adj.sum(axis=1)
    d_inv_sqrt = np.where(d > 0, 1.0 / np.sqrt(d), 0.0)
    lap = np.eye(n) - (adj * d_inv_sqrt[:, None]) * d_inv_sqrt[None, :]
    lambda_max = float(np.linalg.eigvalsh(lap).max())
    return ((2.0 / lambda_max) * lap - np.eye(n)).astype(np.float32)


# ----------------------------------------------------------------------------
# Pallas kernel: full encoder (all RNN layers) for one batch tile
# ----------------------------------------------------------------------------
def make_encoder_kernel(num_nodes, batch_tile, rnn_units, num_matrices,
                        num_layers, gate_width, zero_hidden):
    N, Bt, U, K, L, GW = (num_nodes, batch_tile, rnn_units, num_matrices,
                          num_layers, gate_width)
    R = Bt * N  # rows of the row-major (batch-major, then node) activation

    def kernel(*refs):
        if zero_hidden:
            x0_ref, s_ref, w_all_ref, w_ch_ref, bias_ref, h_out_ref = refs
        else:
            x0_ref, h0_ref, s_ref, w_all_ref, w_ch_ref, bias_ref, h_out_ref = refs

        s_bf = s_ref[...]                    # (R, R) bf16, VMEM resident (kron(I_Bt, S))

        def diffuse(v):
            # Chebyshev diffusion terms of v (R, C) f32 -> K bf16 (R, C) terms.
            # Recurrence stays f32; each term is cast to bf16 exactly once and
            # the bf16 copy is reused (next matmul operand + fused-gate concat).
            v_bf = v.astype(jnp.bfloat16)
            terms = [v_bf]
            if K >= 2:
                tkm2_f = v
                tkm1_f = jnp.dot(s_bf, v_bf, preferred_element_type=jnp.float32)
                tkm1_bf = tkm1_f.astype(jnp.bfloat16)
                terms.append(tkm1_bf)
                for _ in range(2, K):
                    tk_f = 2.0 * jnp.dot(s_bf, tkm1_bf,
                                         preferred_element_type=jnp.float32) - tkm2_f
                    tk_bf = tk_f.astype(jnp.bfloat16)
                    terms.append(tk_bf)
                    tkm2_f, tkm1_f, tkm1_bf = tkm1_f, tk_f, tk_bf
            return terms

        x = x0_ref[...]                                            # (R, U) f32
        for layer in range(L):                                     # static loop, value carry
            h = (jnp.zeros((R, U), jnp.float32) if zero_hidden
                 else h0_ref[layer])                               # (R, U) f32
            xh = jnp.concatenate([x, h], axis=1)                   # (R, 2U) f32
            xh_cat = jnp.concatenate(diffuse(xh), axis=1)          # (R, 2KU) bf16

            # one fused MXU dot: r-gate, u-gate and the x-part of the candidate
            pre = jnp.dot(xh_cat, w_all_ref[layer],
                          preferred_element_type=jnp.float32) + bias_ref[layer]
            u = jax.nn.sigmoid(pre[:, U:2 * U])
            c_x = pre[:, 2 * U:3 * U]

            if zero_hidden:
                # h == 0  =>  r*h == 0: the candidate's h-path vanishes.
                c = jnp.tanh(c_x)
                h_new = (1.0 - u) * c
            else:
                r = jax.nn.sigmoid(pre[:, :U])
                rh_cat = jnp.concatenate(diffuse(r * h), axis=1)   # (R, KU) bf16
                c = jnp.tanh(c_x + jnp.dot(rh_cat, w_ch_ref[layer],
                                           preferred_element_type=jnp.float32))
                h_new = u * h + (1.0 - u) * c                      # (R, U) f32

            h_out_ref[layer] = h_new
            x = h_new

    return kernel


# ----------------------------------------------------------------------------
# parameters
# ----------------------------------------------------------------------------
def init_dcgru_params(key, din, units, num_matrices):
    """One deterministic 'sampled' weight draw for a RandDCGRUCell."""
    ks = jax.random.split(key, 6)
    fan_in = num_matrices * (din + units)

    def w(k, rows):
        std = (2.0 / (fan_in + units)) ** 0.5
        a = std * jax.random.normal(k, (num_matrices, rows, units))
        # store at bf16 precision (the kernel matmul dtype) so the pure-JAX
        # reference and the kernel use identical weight values
        return a.astype(jnp.bfloat16).astype(jnp.float32)

    wrx, wrh = w(ks[0], din), w(ks[1], units)
    wux, wuh = w(ks[2], din), w(ks[3], units)
    wcx, wch = w(ks[4], din), w(ks[5], units)
    br = jnp.ones((1, units), jnp.float32)     # gate bias_start = 1.0
    bu = jnp.ones((1, units), jnp.float32)
    bc = jnp.zeros((1, units), jnp.float32)    # candidate bias_start = 0.0
    return (wrx, wrh, br, wux, wuh, bu, wcx, wch, bc)


class EncoderSigmaPallas:
    """Pallas analogue of EncoderSigmaModel.forward."""

    def __init__(self, key, *, num_nodes, rnn_units, input_dim, num_rnn_layers,
                 max_diffusion_step, adj_mx, batch_tile=None):
        assert input_dim <= rnn_units, "kernel pads input features to rnn_units"
        self.num_nodes = num_nodes
        self.rnn_units = rnn_units
        self.input_dim = input_dim
        self.num_rnn_layers = num_rnn_layers
        self.num_matrices = max_diffusion_step + 1   # laplacian -> 1 support
        self.hidden_state_size = num_nodes * rnn_units
        self.batch_tile = batch_tile
        # lane-dense fused-gate output width (>= 3U, multiple of 128)
        self.gate_width = ((3 * rnn_units + 127) // 128) * 128

        # support, quantized once to bf16 precision so reference == kernel values
        s = calculate_scaled_laplacian(adj_mx)
        s_q = jnp.asarray(s).astype(jnp.bfloat16).astype(jnp.float32)
        self.support_jnp = s_q                        # f32 (reference)
        self._support_np = np.asarray(s_q)
        self._kron_cache = {}

        keys = jax.random.split(key, num_rnn_layers)
        self.layer_params = []
        for layer in range(num_rnn_layers):
            din = input_dim if layer == 0 else rnn_units
            self.layer_params.append(
                init_dcgru_params(keys[layer], din, rnn_units, self.num_matrices))
        self._build_fused_weights()

    # -- fused weights: [x_k rows | h_k rows] per term, columns [r | u | c_x | pad]
    def _build_fused_weights(self):
        K, U, GW = self.num_matrices, self.rnn_units, self.gate_width
        w_all, w_ch, biases = [], [], []
        for params in self.layer_params:
            wrx, wrh, br, wux, wuh, bu, wcx, wch, bc = params
            din = wrx.shape[1]
            blocks = []
            for kk in range(K):
                xr = jnp.concatenate([wrx[kk], wux[kk], wcx[kk]], axis=1)       # (din, 3U)
                xr = jnp.pad(xr, ((0, U - din), (0, GW - 3 * U)))               # (U, GW)
                # no direct h contribution to c (that goes through the (r*h) dot)
                hr = jnp.concatenate([wrh[kk], wuh[kk],
                                      jnp.zeros((U, U), jnp.float32)], axis=1)  # (U, 3U)
                hr = jnp.pad(hr, ((0, 0), (0, GW - 3 * U)))                     # (U, GW)
                blocks.append(jnp.concatenate([xr, hr], axis=0))                # (2U, GW)
            w_all.append(jnp.concatenate(blocks, axis=0))                       # (2KU, GW)
            w_ch.append(jnp.concatenate([wch[j] for j in range(K)], axis=0))    # (KU, U)
            bias = jnp.concatenate([br, bu, bc], axis=1)                        # (1, 3U)
            biases.append(jnp.pad(bias, ((0, 0), (0, GW - 3 * U))))             # (1, GW)
        self.w_all = jnp.stack(w_all).astype(jnp.bfloat16)      # (L, 2KU, GW) resident
        self.w_ch = jnp.stack(w_ch).astype(jnp.bfloat16)        # (L, KU,  U)  resident
        self.bias_all = jnp.stack(biases).astype(jnp.float32)   # (L, 1,  GW)  resident

    def _support_kron(self, bt):
        # block-diagonal kron(I_Bt, S), pre-cast to bf16: diffusion and the gate
        # matmuls share the same row-major layout -> no in-kernel shuffles.
        if bt not in self._kron_cache:
            big = np.kron(np.eye(bt, dtype=np.float32), self._support_np)
            self._kron_cache[bt] = jnp.asarray(big, dtype=jnp.bfloat16)
        return self._kron_cache[bt]

    def _pick_batch_tile(self, b):
        bt = self.batch_tile
        if bt is None or bt <= 0 or b % bt != 0:
            # prefer >=2 batch tiles so the "parallel" axis spans both v7x TCs
            bt = b // 2 if (b % 2 == 0 and b >= 2) else b
        if bt != b and (bt * self.num_nodes) % 8 != 0:
            bt = b   # full-batch block is exempt from the (8,128) rule
        return bt

    def _vmem_limit_bytes(self, bt, zero_hidden):
        n, u, l, k, gw = (self.num_nodes, self.rnn_units, self.num_rnn_layers,
                          self.num_matrices, self.gate_width)
        r = bt * n
        act_blk = r * u * 4
        streamed = act_blk * (1 + l) + (0 if zero_hidden else l * act_blk)
        resident = r * r * 2 + l * (2 * k * u * gw * 2 + k * u * u * 2 + gw * 4)
        temps = r * (2 * k * u * 2 + gw * 4 + 8 * u * 4)
        est = 2 * streamed + resident + temps
        est = 2 * est + (4 << 20)                       # headroom
        return int(min(max(est, 32 << 20), 48 << 20))   # stay safe on v7x (64 MiB VMEM)

    def __call__(self, inputs, hidden_state=None):
        b = int(inputs.shape[0])
        n, u = self.num_nodes, self.rnn_units
        l, k, gw = self.num_rnn_layers, self.num_matrices, self.gate_width
        zero_hidden = hidden_state is None

        bt = self._pick_batch_tile(b)
        grid = (b // bt,)

        # torch layout -> row-major (b*n, u) kernel layout; features padded to U
        x0 = inputs.reshape(b, n, self.input_dim).astype(jnp.float32)
        x0 = jnp.pad(x0, ((0, 0), (0, 0), (0, u - self.input_dim))).reshape(b * n, u)

        in_arrays = [x0]
        in_specs = [pl.BlockSpec((bt * n, u), lambda i: (i, 0))]
        if not zero_hidden:
            h0 = jnp.asarray(hidden_state, jnp.float32).reshape(l, b * n, u)
            in_arrays.append(h0)
            in_specs.append(pl.BlockSpec((l, bt * n, u), lambda i: (0, i, 0)))

        s_big = self._support_kron(bt)                               # (bt*n, bt*n) bf16
        in_arrays += [s_big, self.w_all, self.w_ch, self.bias_all]
        in_specs += [
            pl.BlockSpec((bt * n, bt * n), lambda i: (0, 0)),        # resident support
            pl.BlockSpec((l, 2 * k * u, gw), lambda i: (0, 0, 0)),   # resident weights
            pl.BlockSpec((l, k * u, u), lambda i: (0, 0, 0)),
            pl.BlockSpec((l, 1, gw), lambda i: (0, 0, 0)),
        ]

        kernel = make_encoder_kernel(n, bt, u, k, l, gw, zero_hidden)
        h_all = pl.pallas_call(
            kernel,
            out_shape=jax.ShapeDtypeStruct((l, b * n, u), jnp.float32),
            grid_spec=pltpu.PrefetchScalarGridSpec(
                num_scalar_prefetch=0,
                grid=grid,
                in_specs=in_specs,
                out_specs=pl.BlockSpec((l, bt * n, u), lambda i: (0, i, 0)),
            ),
            compiler_params=pltpu.CompilerParams(
                dimension_semantics=("parallel",),
                vmem_limit_bytes=self._vmem_limit_bytes(bt, zero_hidden),
            ),
        )(*in_arrays)

        h_all = h_all.reshape(l, b, n * u)     # torch layout (lower index = lower layer)
        return h_all[-1], h_all


# ----------------------------------------------------------------------------
# Pure-JAX reference (torch-style batch-major layout) for validation
# ----------------------------------------------------------------------------
def dcgru_cell_ref(x_bnc, h_bnu, support, params, num_matrices):
    wrx, wrh, br, wux, wuh, bu, wcx, wch, bc = params
    bsz, n, _ = x_bnc.shape

    def diffuse(v):
        outs = [v]
        if num_matrices >= 2:
            t0 = v
            t1 = jnp.einsum('nm,bmc->bnc', support, v)
            outs.append(t1)
            for _ in range(2, num_matrices):
                t2 = 2.0 * jnp.einsum('nm,bmc->bnc', support, t1) - t0
                outs.append(t2)
                t0, t1 = t1, t2
        return outs

    def gconv(a_t, b_t, wa, wb, bias):
        o = wa.shape[2]
        acc = jnp.zeros((bsz, n, o), jnp.float32) + bias
        for kk in range(num_matrices):
            acc = acc + jnp.einsum('bnc,co->bno', a_t[kk], wa[kk])
            acc = acc + jnp.einsum('bnc,co->bno', b_t[kk], wb[kk])
        return acc

    xk, hk = diffuse(x_bnc), diffuse(h_bnu)
    r = jax.nn.sigmoid(gconv(xk, hk, wrx, wrh, br))
    u = jax.nn.sigmoid(gconv(xk, hk, wux, wuh, bu))
    c = jnp.tanh(gconv(xk, diffuse(r * h_bnu), wcx, wch, bc))
    return u * h_bnu + (1.0 - u) * c


# ----------------------------------------------------------------------------
if __name__ == "__main__":
    key = jax.random.PRNGKey(0)
    k_adj, k_param, k_in1, k_in2 = jax.random.split(key, 4)

    # config (consistent with Seq2SeqAttrs defaults, small shapes)
    num_nodes = 16
    rnn_units = 32
    input_dim = 2            # feature_dim
    num_rnn_layers = 2
    max_diffusion_step = 2
    batch = 8
    batch_tile = 4           # 2 batch tiles -> "parallel" axis spans both v7x TCs

    # deterministic symmetric adjacency with self loops
    a = np.asarray(jax.random.uniform(k_adj, (num_nodes, num_nodes), jnp.float32))
    adj_mx = (a + a.T) / 2.0 + np.eye(num_nodes, dtype=np.float32)

    model = EncoderSigmaPallas(k_param, num_nodes=num_nodes, rnn_units=rnn_units,
                               input_dim=input_dim, num_rnn_layers=num_rnn_layers,
                               max_diffusion_step=max_diffusion_step, adj_mx=adj_mx,
                               batch_tile=batch_tile)

    x1 = jax.random.normal(k_in1, (batch, num_nodes * input_dim), jnp.float32)
    x2 = jax.random.normal(k_in2, (batch, num_nodes * input_dim), jnp.float32)

    # step 1: hidden_state=None (zero-hidden specialised kernel, no zeros DMA)
    out1, hid1 = model(x1, hidden_state=None)
    # step 2: carry the hidden state (general kernel path)
    out2, hid2 = model(x2, hidden_state=hid1)
    out2 = jax.block_until_ready(out2)
    hid2 = jax.block_until_ready(hid2)

    assert out1.shape == (batch, num_nodes * rnn_units)
    assert hid1.shape == (num_rnn_layers, batch, num_nodes * rnn_units)
    assert out2.shape == (batch, num_nodes * rnn_units)
    assert hid2.shape == (num_rnn_layers, batch, num_nodes * rnn_units)

    # cross-check against a pure-JAX reference of the same math
    # (same bf16-quantized weights/support; the kernel additionally rounds
    #  matmul operands to bf16, hence the relaxed tolerance)
    def ref_step(x_flat, hid_in):
        cur = x_flat.reshape(batch, num_nodes, input_dim)
        outs = []
        for layer in range(num_rnn_layers):
            h_prev = hid_in[layer].reshape(batch, num_nodes, rnn_units)
            cur = dcgru_cell_ref(cur, h_prev, model.support_jnp,
                                 model.layer_params[layer], model.num_matrices)
            outs.append(cur.reshape(batch, num_nodes * rnn_units))
        return jnp.stack(outs)

    zeros_hidden = jnp.zeros((num_rnn_layers, batch, num_nodes * rnn_units), jnp.float32)
    ref1 = ref_step(x1, zeros_hidden)
    ref2 = ref_step(x2, hid1)   # feed the kernel's step-1 hidden: isolates step-2 error

    for got, want, name in ((hid1, ref1, "step1 hidden"),
                            (hid2, ref2, "step2 hidden"),
                            (out2, ref2[-1], "step2 output")):
        if not jnp.allclose(got, want, rtol=5e-2, atol=5e-2):
            err = float(jnp.max(jnp.abs(got - want)))
            raise AssertionError(
                f"Pallas kernel mismatch vs JAX reference ({name}), max abs err {err}")

    print("KERNEL_OK")
</pallas_src>

<mosaic_0001>
module attributes {stable_mosaic.version = 11 : i64} {
  func.func @kernel(%arg0: i32, %arg1: memref<64x32xf32, #tpu.memory_space<vmem>>, %arg2: memref<64x64xbf16, #tpu.memory_space<vmem>>, %arg3: memref<2x192x128xbf16, #tpu.memory_space<vmem>>, %arg4: memref<2x96x32xbf16, #tpu.memory_space<vmem>>, %arg5: memref<2x1x128xf32, #tpu.memory_space<vmem>>, %arg6: memref<2x64x32xf32, #tpu.memory_space<vmem>>) attributes {dimension_semantics = [#tpu.dimension_semantics<parallel>], iteration_bounds = array<i64: 2>, scalar_prefetch = 0 : i64, scratch_operands = 0 : i64, tpu.core_type = #tpu.core_type<tc>, window_params = [{transform_indices = @transform_0, window_bounds = array<i64: 64, 32>}, {pipeline_mode = #tpu.pipeline_mode<synchronous>, transform_indices = @transform_1, window_bounds = array<i64: 64, 64>}, {pipeline_mode = #tpu.pipeline_mode<synchronous>, transform_indices = @transform_2, window_bounds = array<i64: 2, 192, 128>}, {pipeline_mode = #tpu.pipeline_mode<synchronous>, transform_indices = @transform_3, window_bounds = array<i64: 2, 96, 32>}, {pipeline_mode = #tpu.pipeline_mode<synchronous>, transform_indices = @transform_4, window_bounds = array<i64: 2, 1, 128>}, {transform_indices = @transform_5, window_bounds = array<i64: 2, 64, 32>}]} {
    %c0 = arith.constant 0 : index
    %c0_0 = arith.constant 0 : index
    %0 = vector.load %arg2[%c0, %c0_0] : memref<64x64xbf16, #tpu.memory_space<vmem>>, vector<64x64xbf16>
    %c0_1 = arith.constant 0 : index
    %c0_2 = arith.constant 0 : index
    %1 = vector.load %arg1[%c0_1, %c0_2] : memref<64x32xf32, #tpu.memory_space<vmem>>, vector<64x32xf32>
    %cst = arith.constant 0.000000e+00 : f32
    %2 = vector.broadcast %cst : f32 to vector<64x32xf32>
    %3 = tpu.concatenate %1, %2 in 1 : vector<64x32xf32>, vector<64x32xf32> -> vector<64x64xf32>
    %4 = arith.truncf %3 : vector<64x64xf32> to vector<64x64xbf16>
    %cst_3 = arith.constant dense<0.000000e+00> : vector<64x64xf32>
    %5 = tpu.matmul %0, %4, %cst_3 {dimension_numbers = #tpu.dot_dimension_numbers<[1], [0], [0], [1], [0, 0, 1, 1], [], []>} : vector<64x64xbf16>, vector<64x64xbf16>, vector<64x64xf32> -> vector<64x64xf32>
    %6 = arith.truncf %5 : vector<64x64xf32> to vector<64x64xbf16>
    %cst_4 = arith.constant dense<0.000000e+00> : vector<64x64xf32>
    %7 = tpu.matmul %0, %6, %cst_4 {dimension_numbers = #tpu.dot_dimension_numbers<[1], [0], [0], [1], [0, 0, 1, 1], [], []>} : vector<64x64xbf16>, vector<64x64xbf16>, vector<64x64xf32> -> vector<64x64xf32>
    %cst_5 = arith.constant 2.000000e+00 : f32
    %8 = vector.broadcast %cst_5 : f32 to vector<64x64xf32>
    %9 = arith.mulf %8, %7 : vector<64x64xf32>
    %10 = arith.subf %9, %3 : vector<64x64xf32>
    %11 = arith.truncf %10 : vector<64x64xf32> to vector<64x64xbf16>
    %12 = tpu.concatenate %4, %6, %11 in 1 : vector<64x64xbf16>, vector<64x64xbf16>, vector<64x64xbf16> -> vector<64x192xbf16>
    %c0_6 = arith.constant 0 : index
    %c0_7 = arith.constant 0 : index
    %c0_8 = arith.constant 0 : index
    %13 = vector.load %arg3[%c0_6, %c0_7, %c0_8] : memref<2x192x128xbf16, #tpu.memory_space<vmem>>, vector<1x192x128xbf16>
    %14 = vector.shape_cast %13 : vector<1x192x128xbf16> to vector<192x128xbf16>
    %cst_9 = arith.constant dense<0.000000e+00> : vector<64x128xf32>
    %15 = tpu.matmul %12, %14, %cst_9 {dimension_numbers = #tpu.dot_dimension_numbers<[1], [0], [0], [1], [0, 0, 1, 1], [], []>} : vector<64x192xbf16>, vector<192x128xbf16>, vector<64x128xf32> -> vector<64x128xf32>
    %c0_10 = arith.constant 0 : index
    %c0_11 = arith.constant 0 : index
    %c0_12 = arith.constant 0 : index
    %16 = vector.load %arg5[%c0_10, %c0_11, %c0_12] : memref<2x1x128xf32, #tpu.memory_space<vmem>>, vector<1x1x128xf32>
    %17 = vector.shape_cast %16 : vector<1x1x128xf32> to vector<1x128xf32>
    %18 = vector.broadcast %17 : vector<1x128xf32> to vector<64x128xf32>
    %19 = arith.addf %15, %18 : vector<64x128xf32>
    %20 = vector.extract_strided_slice %19 {offsets = [0, 32], sizes = [64, 32], strides = [1, 1]} : vector<64x128xf32> to vector<64x32xf32>
    %21 = arith.negf %20 : vector<64x32xf32>
    %22 = math.exp %21 : vector<64x32xf32>
    %cst_13 = arith.constant 1.000000e+00 : f32
    %23 = vector.broadcast %cst_13 : f32 to vector<64x32xf32>
    %24 = arith.addf %23, %22 : vector<64x32xf32>
    %25 = arith.divf %23, %24 : vector<64x32xf32>
    %26 = vector.extract_strided_slice %19 {offsets = [0, 64], sizes = [64, 32], strides = [1, 1]} : vector<64x128xf32> to vector<64x32xf32>
    %27 = math.tanh %26 : vector<64x32xf32>
    %cst_14 = arith.constant 1.000000e+00 : f32
    %28 = vector.broadcast %cst_14 : f32 to vector<64x32xf32>
    %29 = arith.subf %28, %25 : vector<64x32xf32>
    %30 = arith.mulf %29, %27 : vector<64x32xf32>
    %c0_15 = arith.constant 0 : index
    %c0_16 = arith.constant 0 : index
    %c0_17 = arith.constant 0 : index
    %31 = vector.load %arg6[%c0_15, %c0_16, %c0_17] : memref<2x64x32xf32, #tpu.memory_space<vmem>>, vector<1x64x32xf32>
    %32 = vector.shape_cast %31 : vector<1x64x32xf32> to vector<64x32xf32>
    %33 = vector.shape_cast %30 : vector<64x32xf32> to vector<1x64x32xf32>
    tpu.vector_store %arg6[%c0_15, %c0_16, %c0_17], %33 {strides = array<i32>} : memref<2x64x32xf32, #tpu.memory_space<vmem>>, vector<1x64x32xf32>,
    %cst_18 = arith.constant 0.000000e+00 : f32
    %34 = vector.broadcast %cst_18 : f32 to vector<64x32xf32>
    %35 = tpu.concatenate %30, %34 in 1 : vector<64x32xf32>, vector<64x32xf32> -> vector<64x64xf32>
    %36 = arith.truncf %35 : vector<64x64xf32> to vector<64x64xbf16>
    %cst_19 = arith.constant dense<0.000000e+00> : vector<64x64xf32>
    %37 = tpu.matmul %0, %36, %cst_19 {dimension_numbers = #tpu.dot_dimension_numbers<[1], [0], [0], [1], [0, 0, 1, 1], [], []>} : vector<64x64xbf16>, vector<64x64xbf16>, vector<64x64xf32> -> vector<64x64xf32>
    %38 = arith.truncf %37 : vector<64x64xf32> to vector<64x64xbf16>
    %cst_20 = arith.constant dense<0.000000e+00> : vector<64x64xf32>
    %39 = tpu.matmul %0, %38, %cst_20 {dimension_numbers = #tpu.dot_dimension_numbers<[1], [0], [0], [1], [0, 0, 1, 1], [], []>} : vector<64x64xbf16>, vector<64x64xbf16>, vector<64x64xf32> -> vector<64x64xf32>
    %cst_21 = arith.constant 2.000000e+00 : f32
    %40 = vector.broadcast %cst_21 : f32 to vector<64x64xf32>
    %41 = arith.mulf %40, %39 : vector<64x64xf32>
    %42 = arith.subf %41, %35 : vector<64x64xf32>
    %43 = arith.truncf %42 : vector<64x64xf32> to vector<64x64xbf16>
    %44 = tpu.concatenate %36, %38, %43 in 1 : vector<64x64xbf16>, vector<64x64xbf16>, vector<64x64xbf16> -> vector<64x192xbf16>
    %c1 = arith.constant 1 : index
    %c0_22 = arith.constant 0 : index
    %c0_23 = arith.constant 0 : index
    %45 = vector.load %arg3[%c1, %c0_22, %c0_23] : memref<2x192x128xbf16, #tpu.memory_space<vmem>>, vector<1x192x128xbf16>
    %46 = vector.shape_cast %45 : vector<1x192x128xbf16> to vector<192x128xbf16>
    %cst_24 = arith.constant dense<0.000000e+00> : vector<64x128xf32>
    %47 = tpu.matmul %44, %46, %cst_24 {dimension_numbers = #tpu.dot_dimension_numbers<[1], [0], [0], [1], [0, 0, 1, 1], [], []>} : vector<64x192xbf16>, vector<192x128xbf16>, vector<64x128xf32> -> vector<64x128xf32>
    %c1_25 = arith.constant 1 : index
    %c0_26 = arith.constant 0 : index
    %c0_27 = arith.constant 0 : index
    %48 = vector.load %arg5[%c1_25, %c0_26, %c0_27] : memref<2x1x128xf32, #tpu.memory_space<vmem>>, vector<1x1x128xf32>
    %49 = vector.shape_cast %48 : vector<1x1x128xf32> to vector<1x128xf32>
    %50 = vector.broadcast %49 : vector<1x128xf32> to vector<64x128xf32>
    %51 = arith.addf %47, %50 : vector<64x128xf32>
    %52 = vector.extract_strided_slice %51 {offsets = [0, 32], sizes = [64, 32], strides = [1, 1]} : vector<64x128xf32> to vector<64x32xf32>
    %53 = arith.negf %52 : vector<64x32xf32>
    %54 = math.exp %53 : vector<64x32xf32>
    %cst_28 = arith.constant 1.000000e+00 : f32
    %55 = vector.broadcast %cst_28 : f32 to vector<64x32xf32>
    %56 = arith.addf %55, %54 : vector<64x32xf32>
    %57 = arith.divf %55, %56 : vector<64x32xf32>
    %58 = vector.extract_strided_slice %51 {offsets = [0, 64], sizes = [64, 32], strides = [1, 1]} : vector<64x128xf32> to vector<64x32xf32>
    %59 = math.tanh %58 : vector<64x32xf32>
    %cst_29 = arith.constant 1.000000e+00 : f32
    %60 = vector.broadcast %cst_29 : f32 to vector<64x32xf32>
    %61 = arith.subf %60, %57 : vector<64x32xf32>
    %62 = arith.mulf %61, %59 : vector<64x32xf32>
    %c1_30 = arith.constant 1 : index
    %c0_31 = arith.constant 0 : index
    %c0_32 = arith.constant 0 : index
    %63 = vector.load %arg6[%c1_30, %c0_31, %c0_32] : memref<2x64x32xf32, #tpu.memory_space<vmem>>, vector<1x64x32xf32>
    %64 = vector.shape_cast %63 : vector<1x64x32xf32> to vector<64x32xf32>
    %65 = vector.shape_cast %62 : vector<64x32xf32> to vector<1x64x32xf32>
    tpu.vector_store %arg6[%c1_30, %c0_31, %c0_32], %65 {strides = array<i32>} : memref<2x64x32xf32, #tpu.memory_space<vmem>>, vector<1x64x32xf32>,
    return
  }
  func.func @transform_0(%arg0: i32) -> (i32, i32) {
    %c0_i32 = arith.constant 0 : i32
    %c0_i32_0 = arith.constant 0 : i32
    return %arg0, %c0_i32 : i32, i32
  }
  func.func @transform_1(%arg0: i32) -> (i32, i32) {
    %c0_i32 = arith.constant 0 : i32
    %c0_i32_0 = arith.constant 0 : i32
    %c0_i32_1 = arith.constant 0 : i32
    return %c0_i32, %c0_i32_0 : i32, i32
  }
  func.func @transform_2(%arg0: i32) -> (i32, i32, i32) {
    %c0_i32 = arith.constant 0 : i32
    %c0_i32_0 = arith.constant 0 : i32
    %c0_i32_1 = arith.constant 0 : i32
    %c0_i32_2 = arith.constant 0 : i32
    return %c0_i32, %c0_i32_0, %c0_i32_1 : i32, i32, i32
  }
  func.func @transform_3(%arg0: i32) -> (i32, i32, i32) {
    %c0_i32 = arith.constant 0 : i32
    %c0_i32_0 = arith.constant 0 : i32
    %c0_i32_1 = arith.constant 0 : i32
    %c0_i32_2 = arith.constant 0 : i32
    return %c0_i32, %c0_i32_0, %c0_i32_1 : i32, i32, i32
  }
  func.func @transform_4(%arg0: i32) -> (i32, i32, i32) {
    %c0_i32 = arith.constant 0 : i32
    %c0_i32_0 = arith.constant 0 : i32
    %c0_i32_1 = arith.constant 0 : i32
    %c0_i32_2 = arith.constant 0 : i32
    return %c0_i32, %c0_i32_0, %c0_i32_1 : i32, i32, i32
  }
  func.func @transform_5(%arg0: i32) -> (i32, i32, i32) {
    %c0_i32 = arith.constant 0 : i32
    %c0_i32_0 = arith.constant 0 : i32
    %c0_i32_1 = arith.constant 0 : i32
    return %c0_i32, %arg0, %c0_i32_0 : i32, i32, i32
  }
}

</mosaic_0001>

<llo_original>
// kernel: tpu_custom_call.1
$region0: #{tpu_custom_call.1}
  #allocation0 [shape = 'u32[]', space=smem, size = 0x4, offset = 0x4, fixed_abs, tag = 'smem constant byte address 0x4 - core index']
  #allocation1 [shape = 'u32[72,128]{1,0:T(1,128)}', space=vmem, size = 0x9000, scoped, tag = 'internal scratch']
  %s0 = inlined_call_operand.vmem [shape: f32[128,32], index: 0, kind: input, shape index: {}]
  %s1 = inlined_call_operand.vmem [shape: bf16[64,64], index: 1, kind: input, shape index: {}]
  %s2 = inlined_call_operand.vmem [shape: bf16[2,192,128], index: 2, kind: input, shape index: {}]
  %s3 = inlined_call_operand.vmem [shape: bf16[2,96,32], index: 3, kind: input, shape index: {}]
  %s4 = inlined_call_operand.vmem [shape: f32[2,1,128], index: 4, kind: input, shape index: {}]
  %s5 = inlined_call_operand.vmem [shape: f32[2,128,32], index: 5, kind: output, shape index: {}]
  %s6 = sld [smem:[#allocation0]]
  $region87: #{tpu_custom_call.1} parent=0
    _
  %s8 = ssub.s32 1, %s6
  %s9 = scalar_select 0, %s8, %s6
  $region1: #{tpu_custom_call.1} parent=0
    #allocation2 [shape = 'u8[131072]{0}', space=vmem, size = 0x20000, scoped, tag = 'output window, operand 0']
    loop: start=0, step=1, limit=4
    $region2: #{tpu_custom_call.1} parent=1 // loop_pre_header
      _
    $region3: #{tpu_custom_call.1} parent=1 // loop_header
      %s11 = sphi 0, %s15
      %p12 = scmp.ge.s32.totalorder %s11, 4
      %s21 = sphi 0, %s23
      %s24 = sphi 0, %s21
      %s25 = sphi 0, %s24
      %s41 = sphi 0, %s25
      %s45 = sphi 0, %s45
      %s47 = sphi 0, %s45
      %s48 = sphi 0, %s47
      %s62 = sphi 0, %s48
      %s66 = sphi 0, %s66
      %s68 = sphi 0, %s66
      %s69 = sphi 0, %s68
      %s83 = sphi 0, %s69
      %s87 = sphi 0, %s87
      %s89 = sphi 0, %s87
      %s90 = sphi 0, %s89
      %s104 = sphi 0, %s90
      %s108 = sphi 0, %s108
      %s110 = sphi 0, %s108
      %s111 = sphi 0, %s110
      %s125 = sphi 0, %s111
      %s131 = sphi 0, %s133
      %s134 = sphi 0, %s131
      %s135 = sphi 0, %s134
      %s151 = sphi 0, %s135
    $region4: #{tpu_custom_call.1} parent=1 // loop_header_branch
      %14 = sbr.rel (%p12) target = $region8
    $region5: #{tpu_custom_call.1} parent=1 // loop_body
      %s16 = ssub.s32 %s11, 1
      %s17 = ssub.s32 %s11, 2
      %s18 = sadd.s32 %s11, 1
      %s19 = ssub.s32 %s11, %s18
      %p20 = scmp.eq.s32.totalorder %s19, 0
      %s22 = sadd.s32 %s21, 1
      %s23 = scalar_select %p20, %s21, %s22
      %p26 = pneg %p20
      %p27 = scmp.eq.s32.totalorder %s11, 1
      %p28 = por %p26, %p27
      %p29 = scmp.ne.s32.totalorder %s21, %s24
      %p30 = scmp.eq.s32.totalorder %s11, 0
      %p31 = por %p29, %p30
      %p32 = scmp.ne.s32.totalorder %s21, %s24
      %p33 = scmp.eq.s32.totalorder %s16, 1
      %p34 = por %p32, %p33
      %p35 = scmp.ne.s32.totalorder %s24, %s25
      %p36 = scmp.eq.s32.totalorder %s16, 0
      %p37 = por %p35, %p36
      %p38 = scmp.ne.s32.totalorder %s24, %s25
      %p39 = scmp.eq.s32.totalorder %s17, 1
      %p40 = por %p38, %p39
      %p42 = scmp.ne.s32.totalorder %s25, %s41
      %p43 = scmp.eq.s32.totalorder %s17, 0
      %p44 = por %p42, %p43
      %s46 = sadd.s32 %s45, 1
      %p49 = scmp.eq.s32.totalorder %s11, 1
      %p50 = scmp.ne.s32.totalorder %s45, %s47
      %p51 = scmp.eq.s32.totalorder %s11, 0
      %p52 = por %p50, %p51
      %p53 = scmp.ne.s32.totalorder %s45, %s47
      %p54 = scmp.eq.s32.totalorder %s16, 1
      %p55 = por %p53, %p54
      %p56 = scmp.ne.s32.totalorder %s47, %s48
      %p57 = scmp.eq.s32.totalorder %s16, 0
      %p58 = por %p56, %p57
      %p59 = scmp.ne.s32.totalorder %s47, %s48
      %p60 = scmp.eq.s32.totalorder %s17, 1
      %p61 = por %p59, %p60
      %p63 = scmp.ne.s32.totalorder %s48, %s62
      %p64 = scmp.eq.s32.totalorder %s17, 0
      %p65 = por %p63, %p64
      %s67 = sadd.s32 %s66, 1
      %p70 = scmp.eq.s32.totalorder %s11, 1
      %p71 = scmp.ne.s32.totalorder %s66, %s68
      %p72 = scmp.eq.s32.totalorder %s11, 0
      %p73 = por %p71, %p72
      %p74 = scmp.ne.s32.totalorder %s66, %s68
      %p75 = scmp.eq.s32.totalorder %s16, 1
      %p76 = por %p74, %p75
      %p77 = scmp.ne.s32.totalorder %s68, %s69
      %p78 = scmp.eq.s32.totalorder %s16, 0
      %p79 = por %p77, %p78
      %p80 = scmp.ne.s32.totalorder %s68, %s69
      %p81 = scmp.eq.s32.totalorder %s17, 1
      %p82 = por %p80, %p81
      %p84 = scmp.ne.s32.totalorder %s69, %s83
      %p85 = scmp.eq.s32.totalorder %s17, 0
      %p86 = por %p84, %p85
      %s88 = sadd.s32 %s87, 1
      %p91 = scmp.eq.s32.totalorder %s11, 1
      %p92 = scmp.ne.s32.totalorder %s87, %s89
      %p93 = scmp.eq.s32.totalorder %s11, 0
      %p94 = por %p92, %p93
      %p95 = scmp.ne.s32.totalorder %s87, %s89
      %p96 = scmp.eq.s32.totalorder %s16, 1
      %p97 = por %p95, %p96
      %p98 = scmp.ne.s32.totalorder %s89, %s90
      %p99 = scmp.eq.s32.totalorder %s16, 0
      %p100 = por %p98, %p99
      %p101 = scmp.ne.s32.totalorder %s89, %s90
      %p102 = scmp.eq.s32.totalorder %s17, 1
      %p103 = por %p101, %p102
      %p105 = scmp.ne.s32.totalorder %s90, %s104
      %p106 = scmp.eq.s32.totalorder %s17, 0
      %p107 = por %p105, %p106
      %s109 = sadd.s32 %s108, 1
      %p112 = scmp.eq.s32.totalorder %s11, 1
      %p113 = scmp.ne.s32.totalorder %s108, %s110
      %p114 = scmp.eq.s32.totalorder %s11, 0
      %p115 = por %p113, %p114
      %p116 = scmp.ne.s32.totalorder %s108, %s110
      %p117 = scmp.eq.s32.totalorder %s16, 1
      %p118 = por %p116, %p117
      %p119 = scmp.ne.s32.totalorder %s110, %s111
      %p120 = scmp.eq.s32.totalorder %s16, 0
      %p121 = por %p119, %p120
      %p122 = scmp.ne.s32.totalorder %s110, %s111
      %p123 = scmp.eq.s32.totalorder %s17, 1
      %p124 = por %p122, %p123
      %p126 = scmp.ne.s32.totalorder %s111, %s125
      %p127 = scmp.eq.s32.totalorder %s17, 0
      %p128 = por %p126, %p127
      %s129 = ssub.s32 %s11, %s18
      %p130 = scmp.eq.s32.totalorder %s129, 0
      %s132 = sadd.s32 %s131, 1
      %s133 = scalar_select %p130, %s131, %s132
      %p136 = pneg %p130
      %p137 = scmp.eq.s32.totalorder %s11, 1
      %p138 = por %p136, %p137
      %p139 = scmp.ne.s32.totalorder %s131, %s134
      %p140 = scmp.eq.s32.totalorder %s11, 0
      %p141 = por %p139, %p140
      %p142 = scmp.ne.s32.totalorder %s131, %s134
      %p143 = scmp.eq.s32.totalorder %s16, 1
      %p144 = por %p142, %p143
      %p145 = scmp.ne.s32.totalorder %s134, %s135
      %p146 = scmp.eq.s32.totalorder %s16, 0
      %p147 = por %p145, %p146
      %p148 = scmp.ne.s32.totalorder %s134, %s135
      %p149 = scmp.eq.s32.totalorder %s17, 1
      %p150 = por %p148, %p149
      %p152 = scmp.ne.s32.totalorder %s135, %s151
      %p153 = scmp.eq.s32.totalorder %s17, 0
      %p154 = por %p152, %p153
      %p155 = scmp.le.s32.totalorder 1, %s11
      %p156 = scmp.lt.s32.totalorder %s11, 3
      %p157 = pnand %p155, %p156
      %p158 = pneg %p157
      // Predicated region
      $region9: #{tpu_custom_call.1} parent=5 // pred_check
        _
      $region10: #{tpu_custom_call.1} parent=5 // pred_check_branch
        %160 = sbr.rel (%p157) target = $region12
      $region11: #{tpu_custom_call.1} parent=5 // pred_region
        %s161 = ssub.s32 %s11, 1
        // Predicated region
        $region13: #{tpu_custom_call.1} parent=11 // pred_check
          %p162 = pneg %p58
        $region14: #{tpu_custom_call.1} parent=11 // pred_check_branch
          %164 = sbr.rel (%p162) target = $region16
        $region15: #{tpu_custom_call.1} parent=11 // pred_region
          _
        $region16: #{tpu_custom_call.1} parent=11 // pred_fallthru
          _
        // Predicated region
        $region17: #{tpu_custom_call.1} parent=11 // pred_check
          %p165 = pneg %p79
        $region18: #{tpu_custom_call.1} parent=11 // pred_check_branch
          %167 = sbr.rel (%p165) target = $region20
        $region19: #{tpu_custom_call.1} parent=11 // pred_region
          _
        $region20: #{tpu_custom_call.1} parent=11 // pred_fallthru
          _
        // Predicated region
        $region21: #{tpu_custom_call.1} parent=11 // pred_check
          %p168 = pneg %p100
        $region22: #{tpu_custom_call.1} parent=11 // pred_check_branch
          %170 = sbr.rel (%p168) target = $region24
        $region23: #{tpu_custom_call.1} parent=11 // pred_region
          _
        $region24: #{tpu_custom_call.1} parent=11 // pred_fallthru
          _
        // Predicated region
        $region25: #{tpu_custom_call.1} parent=11 // pred_check
          %p171 = pneg %p121
        $region26: #{tpu_custom_call.1} parent=11 // pred_check_branch
          %173 = sbr.rel (%p171) target = $region28
        $region27: #{tpu_custom_call.1} parent=11 // pred_region
          _
        $region28: #{tpu_custom_call.1} parent=11 // pred_fallthru
          _
      $region12: #{tpu_custom_call.1} parent=5 // pred_fallthru
        _
      %p174 = scmp.lt.s32.totalorder %s11, 2
      // Predicated region
      $region29: #{tpu_custom_call.1} parent=5 // pred_check
        %p175 = pneg %p174
      $region30: #{tpu_custom_call.1} parent=5 // pred_check_branch
        %177 = sbr.rel (%p175) target = $region32
      $region31: #{tpu_custom_call.1} parent=5 // pred_region
        // Predicated region
        $region33: #{tpu_custom_call.1} parent=31 // pred_check
          %p178 = pneg %p31
        $region34: #{tpu_custom_call.1} parent=31 // pred_check_branch
          %180 = sbr.rel (%p178) target = $region36
        $region35: #{tpu_custom_call.1} parent=31 // pred_region
          %s181 = smul.u32 8, %s11
          %p182 = scmp.lt.s32.totalorder %s181, 15
          %s183 = scalar_select %p182, %s181, 15
          %s184 = smul.addr %s183, 8
          %s185 = scalar_lea.vmem %s0, %s184
          %s186 = smul.u32 8, %s11
        $region36: #{tpu_custom_call.1} parent=31 // pred_fallthru
          _
      $region32: #{tpu_custom_call.1} parent=5 // pred_fallthru
        _
      %p187 = scmp.le.s32.totalorder 1, %s11
      %p188 = scmp.lt.s32.totalorder %s11, 3
      %p189 = pnand %p187, %p188
      %p190 = pneg %p189
      // Predicated region
      $region37: #{tpu_custom_call.1} parent=5 // pred_check
        _
      $region38: #{tpu_custom_call.1} parent=5 // pred_check_branch
        %192 = sbr.rel (%p189) target = $region40
      $region39: #{tpu_custom_call.1} parent=5 // pred_region
        %s193 = ssub.s32 %s11, 1
        %s194 = smul.u32 8, %s16
        %p195 = scmp.lt.s32.totalorder %s194, 15
        %s196 = scalar_select %p195, %s194, 15
        %s197 = smul.addr %s196, 8
        %s198 = scalar_lea.vmem %s0, %s197
        %p199 = pneg %p37
        %p200 = pneg %p34
        %p201 = pneg %p58
        %p202 = pneg %p55
        %p203 = pneg %p79
        %p204 = pneg %p76
        %p205 = pneg %p100
        %p206 = pneg %p97
        %p207 = pneg %p121
        %p208 = pneg %p118
        %p209 = pneg %p147
        %p210 = pneg %p144
        %s211 = sand.u32 %s134, 1
        %s212 = sand.u32 %s134, 1
        %s213 = smul.addr %s212, 128
        %s214 = scalar_lea.vmem [#allocation2], %s213
        %s215 = smul.u32 8, %s16
        %p216 = scmp.lt.s32.totalorder %s215, 15
        %s217 = scalar_select %p216, %s215, 15
        %s218 = smul.addr %s217, 8
        %s219 = scalar_lea.vmem %s0, %s218
        %s220 = smul.u32 8, %s16
        %s221 = smul.u32 8, %s16
        %v223 = vld [vmem:[%s1] sm:$0xf]
        %v224 = vld [vmem:[%s1 + $0x4] sm:$0xf]
        %v225 = vld [vmem:[%s1 + $0x8] sm:$0xf]
        %v226 = vld [vmem:[%s1 + $0xc] sm:$0xf]
        %v227 = vld [vmem:[%s1 + $0x10] sm:$0xf]
        %v228 = vld [vmem:[%s1 + $0x14] sm:$0xf]
        %v229 = vld [vmem:[%s1 + $0x18] sm:$0xf]
        %v230 = vld [vmem:[%s1 + $0x1c] sm:$0xf]
        %v231 = vld [vmem:[%s219] sm:$0xff]
        %v232 = vld [vmem:[%s219 + $0x8] sm:$0xff]
        %v233 = vld [vmem:[%s219 + $0x10] sm:$0xff]
        %v234 = vld [vmem:[%s219 + $0x18] sm:$0xff]
        %v235 = vld [vmem:[%s219 + $0x20] sm:$0xff]
        %v236 = vld [vmem:[%s219 + $0x28] sm:$0xff]
        %v237 = vld [vmem:[%s219 + $0x30] sm:$0xff]
        %v238 = vld [vmem:[%s219 + $0x38] sm:$0xff]
        %vm239 = vcmask 261120
        %v240 = vsel %vm239, %v231, 0.0
        %v241 = vsel %vm239, %v232, 0.0
        %v242 = vsel %vm239, %v233, 0.0
        %v243 = vsel %vm239, %v234, 0.0
        %v244 = vsel %vm239, %v235, 0.0
        %v245 = vsel %vm239, %v236, 0.0
        %v246 = vsel %vm239, %v237, 0.0
        %v247 = vsel %vm239, %v238, 0.0
        %v248 = vpack.c.bf16 %v240, %v240
        %v249 = vpack.c.bf16 %v241, %v241
        %v250 = vpack.c.bf16 %v242, %v242
        %v251 = vpack.c.bf16 %v243, %v243
        %v252 = vpack.c.bf16 %v244, %v244
        %v253 = vpack.c.bf16 %v245, %v245
        %v254 = vpack.c.bf16 %v246, %v246
        %v255 = vpack.c.bf16 %v247, %v247
        %v264 = vunpack.c.l.b16 %v223
        %v265 = vunpack.c.l.b16 %v224
        %v266 = vunpack.c.l.b16 %v225
        %v267 = vunpack.c.l.b16 %v226
        %v268 = vunpack.c.l.b16 %v227
        %v269 = vunpack.c.l.b16 %v228
        %v270 = vunpack.c.l.b16 %v229
        %v271 = vunpack.c.l.b16 %v230
        %v272 = vpack.c.b16 %v265, %v264
        %v273 = vpack.c.b16 %v267, %v266
        %v274 = vpack.c.b16 %v269, %v268
        %v275 = vpack.c.b16 %v271, %v270
        %v284 = vunpack.c.l.b16 %v248
        %v285 = vunpack.c.l.b16 %v249
        %v286 = vunpack.c.l.b16 %v250
        %v287 = vunpack.c.l.b16 %v251
        %v288 = vunpack.c.l.b16 %v252
        %v289 = vunpack.c.l.b16 %v253
        %v290 = vunpack.c.l.b16 %v254
        %v291 = vunpack.c.l.b16 %v255
        %v292 = vpack.c.b16 %v285, %v284
        %v293 = vpack.c.b16 %v287, %v286
        %v294 = vpack.c.b16 %v289, %v288
        %v295 = vpack.c.b16 %v291, %v290
        %vm300 = vcmask 523264
        %v302 = vsel %vm300, %v272, 0
        %v305 = vsel %vm300, %v273, 0
        %v308 = vsel %vm300, %v274, 0
        %v311 = vsel %vm300, %v275, 0
        %313 = vmatpush.bf16.msra.mxu0 0
        %314 = vmatpush.bf16.msra.mxu0 0
        %315 = vmatpush.bf16.msra.mxu0 0
        %316 = vmatpush.bf16.msra.mxu0 0
        %317 = vmatpush.bf16.msra.mxu0 %v295
        %318 = vmatpush.bf16.msra.mxu0 %v294
        %319 = vmatpush.bf16.msra.mxu0 %v293
        %320 = vmatpush.bf16.msra.mxu0 %v292
        %321 = vmatmul.bf16.gmra.mxu0 %v302
        %v322 = vpop.f32.mrf.mxu0
        %v323 = vadd.f32 0.0, %v322
        %v324 = vpop.f32.mrf.mxu0
        %v325 = vadd.f32 0.0, %v324
        %326 = vmatmul.bf16.gmra.mxu0 %v305
        %v327 = vpop.f32.mrf.mxu0
        %v328 = vadd.f32 0.0, %v327
        %v329 = vpop.f32.mrf.mxu0
        %v330 = vadd.f32 0.0, %v329
        %331 = vmatmul.bf16.gmra.mxu0 %v308
        %v332 = vpop.f32.mrf.mxu0
        %v333 = vadd.f32 0.0, %v332
        %v334 = vpop.f32.mrf.mxu0
        %v335 = vadd.f32 0.0, %v334
        %336 = vmatmul.bf16.gmra.mxu0 %v311
        %v337 = vpop.f32.mrf.mxu0
        %v338 = vadd.f32 0.0, %v337
        %v339 = vpop.f32.mrf.mxu0
        %v340 = vadd.f32 0.0, %v339
        %341 = vdwg.mxu0
        %v342 = vpack.c.bf16 %v323, %v323
        %v343 = vpack.c.bf16 %v325, %v325
        %v344 = vpack.c.bf16 %v328, %v328
        %v345 = vpack.c.bf16 %v330, %v330
        %v346 = vpack.c.bf16 %v333, %v333
        %v347 = vpack.c.bf16 %v335, %v335
        %v348 = vpack.c.bf16 %v338, %v338
        %v349 = vpack.c.bf16 %v340, %v340
        %v358 = vunpack.c.l.b16 %v342
        %v359 = vunpack.c.l.b16 %v343
        %v360 = vunpack.c.l.b16 %v344
        %v361 = vunpack.c.l.b16 %v345
        %v362 = vunpack.c.l.b16 %v346
        %v363 = vunpack.c.l.b16 %v347
        %v364 = vunpack.c.l.b16 %v348
        %v365 = vunpack.c.l.b16 %v349
        %v366 = vpack.c.b16 %v359, %v358
        %v367 = vpack.c.b16 %v361, %v360
        %v368 = vpack.c.b16 %v363, %v362
        %v369 = vpack.c.b16 %v365, %v364
        %374 = vmatpush.bf16.msra.mxu0 0
        %375 = vmatpush.bf16.msra.mxu0 0
        %376 = vmatpush.bf16.msra.mxu0 0
        %377 = vmatpush.bf16.msra.mxu0 0
        %378 = vmatpush.bf16.msra.mxu0 %v369
        %379 = vmatpush.bf16.msra.mxu0 %v368
        %380 = vmatpush.bf16.msra.mxu0 %v367
        %381 = vmatpush.bf16.msra.mxu0 %v366
        %382 = vmatmul.bf16.gmra.mxu0 %v302
        %v383 = vpop.f32.mrf.mxu0
        %v384 = vadd.f32 0.0, %v383
        %v385 = vpop.f32.mrf.mxu0
        %v386 = vadd.f32 0.0, %v385
        %387 = vmatmul.bf16.gmra.mxu0 %v305
        %v388 = vpop.f32.mrf.mxu0
        %v389 = vadd.f32 0.0, %v388
        %v390 = vpop.f32.mrf.mxu0
        %v391 = vadd.f32 0.0, %v390
        %392 = vmatmul.bf16.gmra.mxu0 %v308
        %v393 = vpop.f32.mrf.mxu0
        %v394 = vadd.f32 0.0, %v393
        %v395 = vpop.f32.mrf.mxu0
        %v396 = vadd.f32 0.0, %v395
        %397 = vmatmul.bf16.gmra.mxu0 %v311
        %v398 = vpop.f32.mrf.mxu0
        %v399 = vadd.f32 0.0, %v398
        %v400 = vpop.f32.mrf.mxu0
        %v401 = vadd.f32 0.0, %v400
        %402 = vdwg.mxu0
        %v403 = vmul.f32 %v384, 2.0
        %v404 = vmul.f32 %v386, 2.0
        %v405 = vmul.f32 %v389, 2.0
        %v406 = vmul.f32 %v391, 2.0
        %v407 = vmul.f32 %v394, 2.0
        %v408 = vmul.f32 %v396, 2.0
        %v409 = vmul.f32 %v399, 2.0
        %v410 = vmul.f32 %v401, 2.0
        %v411 = vsub.f32 %v403, %v240
        %v412 = vsub.f32 %v404, %v241
        %v413 = vsub.f32 %v405, %v242
        %v414 = vsub.f32 %v406, %v243
        %v415 = vsub.f32 %v407, %v244
        %v416 = vsub.f32 %v408, %v245
        %v417 = vsub.f32 %v409, %v246
        %v418 = vsub.f32 %v410, %v247
        %v419 = vpack.c.bf16 %v411, %v411
        %v420 = vpack.c.bf16 %v412, %v412
        %v421 = vpack.c.bf16 %v413, %v413
        %v422 = vpack.c.bf16 %v414, %v414
        %v423 = vpack.c.bf16 %v415, %v415
        %v424 = vpack.c.bf16 %v416, %v416
        %v425 = vpack.c.bf16 %v417, %v417
        %v426 = vpack.c.bf16 %v418, %v418
        %427 = vrot.lane.b32.xlu0 %v366, 64
        %v428 = vpop.permute.xlu0 %427
        %429 = vrot.lane.b32.xlu0 %v367, 64
        %v430 = vpop.permute.xlu0 %429
        %431 = vrot.lane.b32.xlu0 %v368, 64
        %v432 = vpop.permute.xlu0 %431
        %433 = vrot.lane.b32.xlu0 %v369, 64
        %v434 = vpop.permute.xlu0 %433
        %v443 = vunpack.c.l.b16 %v419
        %v444 = vunpack.c.l.b16 %v420
        %v445 = vunpack.c.l.b16 %v421
        %v446 = vunpack.c.l.b16 %v422
        %v447 = vunpack.c.l.b16 %v423
        %v448 = vunpack.c.l.b16 %v424
        %v449 = vunpack.c.l.b16 %v425
        %v450 = vunpack.c.l.b16 %v426
        %v451 = vpack.c.b16 %v444, %v443
        %v452 = vpack.c.b16 %v446, %v445
        %v453 = vpack.c.b16 %v448, %v447
        %v454 = vpack.c.b16 %v450, %v449
        %v457 = vsel %vm300, %v292, %v428
        %v461 = vsel %vm300, %v293, %v430
        %v465 = vsel %vm300, %v294, %v432
        %v469 = vsel %vm300, %v295, %v434
        %v471 = vld [vmem:[%s2] sm:$0xf]
        %v472 = vld [vmem:[%s2 + $0x4] sm:$0xf]
        %v473 = vld [vmem:[%s2 + $0x8] sm:$0xf]
        %v474 = vld [vmem:[%s2 + $0xc] sm:$0xf]
        %v475 = vld [vmem:[%s2 + $0x10] sm:$0xf]
        %v476 = vld [vmem:[%s2 + $0x14] sm:$0xf]
        %v477 = vld [vmem:[%s2 + $0x18] sm:$0xf]
        %v478 = vld [vmem:[%s2 + $0x1c] sm:$0xf]
        %v479 = vld [vmem:[%s2 + $0x20] sm:$0xf]
        %v480 = vld [vmem:[%s2 + $0x24] sm:$0xf]
        %v481 = vld [vmem:[%s2 + $0x28] sm:$0xf]
        %v482 = vld [vmem:[%s2 + $0x2c] sm:$0xf]
        %v483 = vld [vmem:[%s2 + $0x30] sm:$0xf]
        %v484 = vld [vmem:[%s2 + $0x34] sm:$0xf]
        %v485 = vld [vmem:[%s2 + $0x38] sm:$0xf]
        %v486 = vld [vmem:[%s2 + $0x3c] sm:$0xf]
        %v487 = vld [vmem:[%s2 + $0x40] sm:$0xf]
        %v488 = vld [vmem:[%s2 + $0x44] sm:$0xf]
        %v489 = vld [vmem:[%s2 + $0x48] sm:$0xf]
        %v490 = vld [vmem:[%s2 + $0x4c] sm:$0xf]
        %v491 = vld [vmem:[%s2 + $0x50] sm:$0xf]
        %v492 = vld [vmem:[%s2 + $0x54] sm:$0xf]
        %v493 = vld [vmem:[%s2 + $0x58] sm:$0xf]
        %v494 = vld [vmem:[%s2 + $0x5c] sm:$0xf]
        %v495 = vld [vmem:[%s4] sm:$0x1]
        %v497 = vperm.slane %v495, 0
        %v523 = vunpack.c.l.b16 %v471
        %v524 = vunpack.c.l.b16 %v472
        %v525 = vunpack.c.l.b16 %v473
        %v526 = vunpack.c.l.b16 %v474
        %v527 = vunpack.c.l.b16 %v475
        %v528 = vunpack.c.l.b16 %v476
        %v529 = vunpack.c.l.b16 %v477
        %v530 = vunpack.c.l.b16 %v478
        %v531 = vunpack.c.l.b16 %v479
        %v532 = vunpack.c.l.b16 %v480
        %v533 = vunpack.c.l.b16 %v481
        %v534 = vunpack.c.l.b16 %v482
        %v535 = vunpack.c.l.b16 %v483
        %v536 = vunpack.c.l.b16 %v484
        %v537 = vunpack.c.l.b16 %v485
        %v538 = vunpack.c.l.b16 %v486
        %v539 = vunpack.c.l.b16 %v487
        %v540 = vunpack.c.l.b16 %v488
        %v541 = vunpack.c.l.b16 %v489
        %v542 = vunpack.c.l.b16 %v490
        %v543 = vunpack.c.l.b16 %v491
        %v544 = vunpack.c.l.b16 %v492
        %v545 = vunpack.c.l.b16 %v493
        %v546 = vunpack.c.l.b16 %v494
        %v547 = vpack.c.b16 %v524, %v523
        %v548 = vpack.c.b16 %v526, %v525
        %v549 = vpack.c.b16 %v528, %v527
        %v550 = vpack.c.b16 %v530, %v529
        %v551 = vpack.c.b16 %v532, %v531
        %v552 = vpack.c.b16 %v534, %v533
        %v553 = vpack.c.b16 %v536, %v535
        %v554 = vpack.c.b16 %v538, %v537
        %v555 = vpack.c.b16 %v540, %v539
        %v556 = vpack.c.b16 %v542, %v541
        %v557 = vpack.c.b16 %v544, %v543
        %v558 = vpack.c.b16 %v546, %v545
        %v572 = vsel %vm300, %v451, 0
        %v575 = vsel %vm300, %v452, 0
        %v578 = vsel %vm300, %v453, 0
        %v581 = vsel %vm300, %v454, 0
        %583 = vmatpush.bf16.msra.mxu0 %v554
        %584 = vmatpush.bf16.msra.mxu0 %v553
        %585 = vmatpush.bf16.msra.mxu0 %v552
        %586 = vmatpush.bf16.msra.mxu0 %v551
        %587 = vmatpush.bf16.msra.mxu0 %v550
        %588 = vmatpush.bf16.msra.mxu0 %v549
        %589 = vmatpush.bf16.msra.mxu0 %v548
        %590 = vmatpush.bf16.msra.mxu0 %v547
        %591 = vmatmul.bf16.gmra.mxu0 %v457
        %v592 = vpop.f32.mrf.mxu0
        %v593 = vadd.f32 %v497, %v592
        %v594 = vpop.f32.mrf.mxu0
        %v595 = vadd.f32 %v497, %v594
        %596 = vmatmul.bf16.gmra.mxu0 %v461
        %v597 = vpop.f32.mrf.mxu0
        %v598 = vadd.f32 %v497, %v597
        %v599 = vpop.f32.mrf.mxu0
        %v600 = vadd.f32 %v497, %v599
        %601 = vmatmul.bf16.gmra.mxu0 %v465
        %v602 = vpop.f32.mrf.mxu0
        %v603 = vadd.f32 %v497, %v602
        %v604 = vpop.f32.mrf.mxu0
        %v605 = vadd.f32 %v497, %v604
        %606 = vmatmul.bf16.gmra.mxu0 %v469
        %v607 = vpop.f32.mrf.mxu0
        %v608 = vadd.f32 %v497, %v607
        %v609 = vpop.f32.mrf.mxu0
        %v610 = vadd.f32 %v497, %v609
        %611 = vdwg.mxu0
        %612 = vmatpush.bf16.msra.mxu0 0
        %613 = vmatpush.bf16.msra.mxu0 0
        %614 = vmatpush.bf16.msra.mxu0 0
        %615 = vmatpush.bf16.msra.mxu0 0
        %616 = vmatpush.bf16.msra.mxu0 %v558
        %617 = vmatpush.bf16.msra.mxu0 %v557
        %618 = vmatpush.bf16.msra.mxu0 %v556
        %619 = vmatpush.bf16.msra.mxu0 %v555
        %620 = vmatmul.bf16.gmra.mxu0 %v572
        %v621 = vpop.f32.mrf.mxu0
        %v622 = vadd.f32 %v593, %v621
        %v623 = vpop.f32.mrf.mxu0
        %v624 = vadd.f32 %v595, %v623
        %625 = vmatmul.bf16.gmra.mxu0 %v575
        %v626 = vpop.f32.mrf.mxu0
        %v627 = vadd.f32 %v598, %v626
        %v628 = vpop.f32.mrf.mxu0
        %v629 = vadd.f32 %v600, %v628
        %630 = vmatmul.bf16.gmra.mxu0 %v578
        %v631 = vpop.f32.mrf.mxu0
        %v632 = vadd.f32 %v603, %v631
        %v633 = vpop.f32.mrf.mxu0
        %v634 = vadd.f32 %v605, %v633
        %635 = vmatmul.bf16.gmra.mxu0 %v581
        %v636 = vpop.f32.mrf.mxu0
        %v637 = vadd.f32 %v608, %v636
        %v638 = vpop.f32.mrf.mxu0
        %v639 = vadd.f32 %v610, %v638
        %640 = vdwg.mxu0
        %v641 = vxor.u32 %v622, 2147483648
        %v642 = vxor.u32 %v624, 2147483648
        %v643 = vxor.u32 %v627, 2147483648
        %v644 = vxor.u32 %v629, 2147483648
        %v645 = vxor.u32 %v632, 2147483648
        %v646 = vxor.u32 %v634, 2147483648
        %v647 = vxor.u32 %v637, 2147483648
        %v648 = vxor.u32 %v639, 2147483648
        %v649 = vmul.f32 %v641, 1.442695
        %v650 = vpow.pop %v649
        %v651 = vmul.f32 %v642, 1.442695
        %v652 = vpow.pop %v651
        %v653 = vmul.f32 %v643, 1.442695
        %v654 = vpow.pop %v653
        %v655 = vmul.f32 %v644, 1.442695
        %v656 = vpow.pop %v655
        %v657 = vmul.f32 %v645, 1.442695
        %v658 = vpow.pop %v657
        %v659 = vmul.f32 %v646, 1.442695
        %v660 = vpow.pop %v659
        %v661 = vmul.f32 %v647, 1.442695
        %v662 = vpow.pop %v661
        %v663 = vmul.f32 %v648, 1.442695
        %v664 = vpow.pop %v663
        %v665 = vadd.f32 %v650, 1.0
        %v666 = vadd.f32 %v652, 1.0
        %v667 = vadd.f32 %v654, 1.0
        %v668 = vadd.f32 %v656, 1.0
        %v669 = vadd.f32 %v658, 1.0
        %v670 = vadd.f32 %v660, 1.0
        %v671 = vadd.f32 %v662, 1.0
        %v672 = vadd.f32 %v664, 1.0
        %v673 = vrcp.pop %v665
        %v674 = vmul.f32 %v665, %v673
        %v675 = vsub.f32 1.0, %v674
        %v676 = vmul.f32 %v673, %v675
        %v677 = vadd.f32 %v673, %v676
        %vm678 = vweird.f32 %v665
        %vm679 = vweird.f32 %v673
        %vm680 = vmor %vm678, %vm679
        %v681 = vsel %vm680, %v673, %v677
        %v682 = vand.u32 2147483647, %v665
        %vm683 = vcmp.eq.f32.partialorder %v682, 8.507059e+37
        %v684 = vand.u32 %v665, 2147483648
        %v685 = vor.u32 1.1754944e-38, %v684
        %v686 = vsel %vm683, %v685, %v681
        %v687 = vmul.f32 1.0, %v686
        %v688 = vrcp.pop %v666
        %v689 = vmul.f32 %v666, %v688
        %v690 = vsub.f32 1.0, %v689
        %v691 = vmul.f32 %v688, %v690
        %v692 = vadd.f32 %v688, %v691
        %vm693 = vweird.f32 %v666
        %vm694 = vweird.f32 %v688
        %vm695 = vmor %vm693, %vm694
        %v696 = vsel %vm695, %v688, %v692
        %v697 = vand.u32 2147483647, %v666
        %vm698 = vcmp.eq.f32.partialorder %v697, 8.507059e+37
        %v699 = vand.u32 %v666, 2147483648
        %v700 = vor.u32 1.1754944e-38, %v699
        %v701 = vsel %vm698, %v700, %v696
        %v702 = vmul.f32 1.0, %v701
        %v703 = vrcp.pop %v667
        %v704 = vmul.f32 %v667, %v703
        %v705 = vsub.f32 1.0, %v704
        %v706 = vmul.f32 %v703, %v705
        %v707 = vadd.f32 %v703, %v706
        %vm708 = vweird.f32 %v667
        %vm709 = vweird.f32 %v703
        %vm710 = vmor %vm708, %vm709
        %v711 = vsel %vm710, %v703, %v707
        %v712 = vand.u32 2147483647, %v667
        %vm713 = vcmp.eq.f32.partialorder %v712, 8.507059e+37
        %v714 = vand.u32 %v667, 2147483648
        %v715 = vor.u32 1.1754944e-38, %v714
        %v716 = vsel %vm713, %v715, %v711
        %v717 = vmul.f32 1.0, %v716
        %v718 = vrcp.pop %v668
        %v719 = vmul.f32 %v668, %v718
        %v720 = vsub.f32 1.0, %v719
        %v721 = vmul.f32 %v718, %v720
        %v722 = vadd.f32 %v718, %v721
        %vm723 = vweird.f32 %v668
        %vm724 = vweird.f32 %v718
        %vm725 = vmor %vm723, %vm724
        %v726 = vsel %vm725, %v718, %v722
        %v727 = vand.u32 2147483647, %v668
        %vm728 = vcmp.eq.f32.partialorder %v727, 8.507059e+37
        %v729 = vand.u32 %v668, 2147483648
        %v730 = vor.u32 1.1754944e-38, %v729
        %v731 = vsel %vm728, %v730, %v726
        %v732 = vmul.f32 1.0, %v731
        %v733 = vrcp.pop %v669
        %v734 = vmul.f32 %v669, %v733
        %v735 = vsub.f32 1.0, %v734
        %v736 = vmul.f32 %v733, %v735
        %v737 = vadd.f32 %v733, %v736
        %vm738 = vweird.f32 %v669
        %vm739 = vweird.f32 %v733
        %vm740 = vmor %vm738, %vm739
        %v741 = vsel %vm740, %v733, %v737
        %v742 = vand.u32 2147483647, %v669
        %vm743 = vcmp.eq.f32.partialorder %v742, 8.507059e+37
        %v744 = vand.u32 %v669, 2147483648
        %v745 = vor.u32 1.1754944e-38, %v744
        %v746 = vsel %vm743, %v745, %v741
        %v747 = vmul.f32 1.0, %v746
        %v748 = vrcp.pop %v670
        %v749 = vmul.f32 %v670, %v748
        %v750 = vsub.f32 1.0, %v749
        %v751 = vmul.f32 %v748, %v750
        %v752 = vadd.f32 %v748, %v751
        %vm753 = vweird.f32 %v670
        %vm754 = vweird.f32 %v748
        %vm755 = vmor %vm753, %vm754
        %v756 = vsel %vm755, %v748, %v752
        %v757 = vand.u32 2147483647, %v670
        %vm758 = vcmp.eq.f32.partialorder %v757, 8.507059e+37
        %v759 = vand.u32 %v670, 2147483648
        %v760 = vor.u32 1.1754944e-38, %v759
        %v761 = vsel %vm758, %v760, %v756
        %v762 = vmul.f32 1.0, %v761
        %v763 = vrcp.pop %v671
        %v764 = vmul.f32 %v671, %v763
        %v765 = vsub.f32 1.0, %v764
        %v766 = vmul.f32 %v763, %v765
        %v767 = vadd.f32 %v763, %v766
        %vm768 = vweird.f32 %v671
        %vm769 = vweird.f32 %v763
        %vm770 = vmor %vm768, %vm769
        %v771 = vsel %vm770, %v763, %v767
        %v772 = vand.u32 2147483647, %v671
        %vm773 = vcmp.eq.f32.partialorder %v772, 8.507059e+37
        %v774 = vand.u32 %v671, 2147483648
        %v775 = vor.u32 1.1754944e-38, %v774
        %v776 = vsel %vm773, %v775, %v771
        %v777 = vmul.f32 1.0, %v776
        %v778 = vrcp.pop %v672
        %v779 = vmul.f32 %v672, %v778
        %v780 = vsub.f32 1.0, %v779
        %v781 = vmul.f32 %v778, %v780
        %v782 = vadd.f32 %v778, %v781
        %vm783 = vweird.f32 %v672
        %vm784 = vweird.f32 %v778
        %vm785 = vmor %vm783, %vm784
        %v786 = vsel %vm785, %v778, %v782
        %v787 = vand.u32 2147483647, %v672
        %vm788 = vcmp.eq.f32.partialorder %v787, 8.507059e+37
        %v789 = vand.u32 %v672, 2147483648
        %v790 = vor.u32 1.1754944e-38, %v789
        %v791 = vsel %vm788, %v790, %v786
        %v792 = vmul.f32 1.0, %v791
        %v793 = vtanh.pop %v622
        %v794 = vtanh.pop %v624
        %v795 = vtanh.pop %v627
        %v796 = vtanh.pop %v629
        %v797 = vtanh.pop %v632
        %v798 = vtanh.pop %v634
        %v799 = vtanh.pop %v637
        %v800 = vtanh.pop %v639
        %v801 = vsub.f32 1.0, %v687
        %v802 = vsub.f32 1.0, %v702
        %v803 = vsub.f32 1.0, %v717
        %v804 = vsub.f32 1.0, %v732
        %v805 = vsub.f32 1.0, %v747
        %v806 = vsub.f32 1.0, %v762
        %v807 = vsub.f32 1.0, %v777
        %v808 = vsub.f32 1.0, %v792
        %817 = vrot.lane.b32.xlu0 %v793, 96
        %v818 = vpop.permute.xlu0 %817
        %819 = vrot.lane.b32.xlu0 %v794, 96
        %v820 = vpop.permute.xlu0 %819
        %821 = vrot.lane.b32.xlu0 %v795, 96
        %v822 = vpop.permute.xlu0 %821
        %823 = vrot.lane.b32.xlu0 %v796, 96
        %v824 = vpop.permute.xlu0 %823
        %825 = vrot.lane.b32.xlu0 %v797, 96
        %v826 = vpop.permute.xlu0 %825
        %827 = vrot.lane.b32.xlu0 %v798, 96
        %v828 = vpop.permute.xlu0 %827
        %829 = vrot.lane.b32.xlu0 %v799, 96
        %v830 = vpop.permute.xlu0 %829
        %831 = vrot.lane.b32.xlu0 %v800, 96
        %v832 = vpop.permute.xlu0 %831
        %v841 = vmul.f32 %v801, %v818
        %v842 = vmul.f32 %v802, %v820
        %v843 = vmul.f32 %v803, %v822
        %v844 = vmul.f32 %v804, %v824
        %v845 = vmul.f32 %v805, %v826
        %v846 = vmul.f32 %v806, %v828
        %v847 = vmul.f32 %v807, %v830
        %v848 = vmul.f32 %v808, %v832
        %857 = vrot.lane.b32.xlu0 %v841, 96
        %v858 = vpop.permute.xlu0 %857
        %859 = vrot.lane.b32.xlu0 %v842, 96
        %v860 = vpop.permute.xlu0 %859
        %861 = vrot.lane.b32.xlu0 %v843, 96
        %v862 = vpop.permute.xlu0 %861
        %863 = vrot.lane.b32.xlu0 %v844, 96
        %v864 = vpop.permute.xlu0 %863
        %865 = vrot.lane.b32.xlu0 %v845, 96
        %v866 = vpop.permute.xlu0 %865
        %867 = vrot.lane.b32.xlu0 %v846, 96
        %v868 = vpop.permute.xlu0 %867
        %869 = vrot.lane.b32.xlu0 %v847, 96
        %v870 = vpop.permute.xlu0 %869
        %871 = vrot.lane.b32.xlu0 %v848, 96
        %v872 = vpop.permute.xlu0 %871
        %881 = vst.msk [vmem:[%s214] sm:$0xff] %vm239, %v858
        %882 = vst.msk [vmem:[%s214 + $0x8] sm:$0xff] %vm239, %v860
        %883 = vst.msk [vmem:[%s214 + $0x10] sm:$0xff] %vm239, %v862
        %884 = vst.msk [vmem:[%s214 + $0x18] sm:$0xff] %vm239, %v864
        %885 = vst.msk [vmem:[%s214 + $0x20] sm:$0xff] %vm239, %v866
        %886 = vst.msk [vmem:[%s214 + $0x28] sm:$0xff] %vm239, %v868
        %887 = vst.msk [vmem:[%s214 + $0x30] sm:$0xff] %vm239, %v870
        %888 = vst.msk [vmem:[%s214 + $0x38] sm:$0xff] %vm239, %v872
        %v889 = vsel %vm239, %v858, 0.0
        %v890 = vsel %vm239, %v860, 0.0
        %v891 = vsel %vm239, %v862, 0.0
        %v892 = vsel %vm239, %v864, 0.0
        %v893 = vsel %vm239, %v866, 0.0
        %v894 = vsel %vm239, %v868, 0.0
        %v895 = vsel %vm239, %v870, 0.0
        %v896 = vsel %vm239, %v872, 0.0
        %v897 = vpack.c.bf16 %v889, %v889
        %v898 = vpack.c.bf16 %v890, %v890
        %v899 = vpack.c.bf16 %v891, %v891
        %v900 = vpack.c.bf16 %v892, %v892
        %v901 = vpack.c.bf16 %v893, %v893
        %v902 = vpack.c.bf16 %v894, %v894
        %v903 = vpack.c.bf16 %v895, %v895
        %v904 = vpack.c.bf16 %v896, %v896
        %v913 = vunpack.c.l.b16 %v897
        %v914 = vunpack.c.l.b16 %v898
        %v915 = vunpack.c.l.b16 %v899
        %v916 = vunpack.c.l.b16 %v900
        %v917 = vunpack.c.l.b16 %v901
        %v918 = vunpack.c.l.b16 %v902
        %v919 = vunpack.c.l.b16 %v903
        %v920 = vunpack.c.l.b16 %v904
        %v921 = vpack.c.b16 %v914, %v913
        %v922 = vpack.c.b16 %v916, %v915
        %v923 = vpack.c.b16 %v918, %v917
        %v924 = vpack.c.b16 %v920, %v919
        %929 = vmatpush.bf16.msra.mxu0 0
        %930 = vmatpush.bf16.msra.mxu0 0
        %931 = vmatpush.bf16.msra.mxu0 0
        %932 = vmatpush.bf16.msra.mxu0 0
        %933 = vmatpush.bf16.msra.mxu0 %v924
        %934 = vmatpush.bf16.msra.mxu0 %v923
        %935 = vmatpush.bf16.msra.mxu0 %v922
        %936 = vmatpush.bf16.msra.mxu0 %v921
        %937 = vmatmul.bf16.gmra.mxu0 %v302
        %v938 = vpop.f32.mrf.mxu0
        %v939 = vadd.f32 0.0, %v938
        %v940 = vpop.f32.mrf.mxu0
        %v941 = vadd.f32 0.0, %v940
        %942 = vmatmul.bf16.gmra.mxu0 %v305
        %v943 = vpop.f32.mrf.mxu0
        %v944 = vadd.f32 0.0, %v943
        %v945 = vpop.f32.mrf.mxu0
        %v946 = vadd.f32 0.0, %v945
        %947 = vmatmul.bf16.gmra.mxu0 %v308
        %v948 = vpop.f32.mrf.mxu0
        %v949 = vadd.f32 0.0, %v948
        %v950 = vpop.f32.mrf.mxu0
        %v951 = vadd.f32 0.0, %v950
        %952 = vmatmul.bf16.gmra.mxu0 %v311
        %v953 = vpop.f32.mrf.mxu0
        %v954 = vadd.f32 0.0, %v953
        %v955 = vpop.f32.mrf.mxu0
        %v956 = vadd.f32 0.0, %v955
        %957 = vdwg.mxu0
        %v958 = vpack.c.bf16 %v939, %v939
        %v959 = vpack.c.bf16 %v941, %v941
        %v960 = vpack.c.bf16 %v944, %v944
        %v961 = vpack.c.bf16 %v946, %v946
        %v962 = vpack.c.bf16 %v949, %v949
        %v963 = vpack.c.bf16 %v951, %v951
        %v964 = vpack.c.bf16 %v954, %v954
        %v965 = vpack.c.bf16 %v956, %v956
        %v974 = vunpack.c.l.b16 %v958
        %v975 = vunpack.c.l.b16 %v959
        %v976 = vunpack.c.l.b16 %v960
        %v977 = vunpack.c.l.b16 %v961
        %v978 = vunpack.c.l.b16 %v962
        %v979 = vunpack.c.l.b16 %v963
        %v980 = vunpack.c.l.b16 %v964
        %v981 = vunpack.c.l.b16 %v965
        %v982 = vpack.c.b16 %v975, %v974
        %v983 = vpack.c.b16 %v977, %v976
        %v984 = vpack.c.b16 %v979, %v978
        %v985 = vpack.c.b16 %v981, %v980
        %990 = vmatpush.bf16.msra.mxu0 0
        %991 = vmatpush.bf16.msra.mxu0 0
        %992 = vmatpush.bf16.msra.mxu0 0
        %993 = vmatpush.bf16.msra.mxu0 0
        %994 = vmatpush.bf16.msra.mxu0 %v985
        %995 = vmatpush.bf16.msra.mxu0 %v984
        %996 = vmatpush.bf16.msra.mxu0 %v983
        %997 = vmatpush.bf16.msra.mxu0 %v982
        %998 = vmatmul.bf16.gmra.mxu0 %v302
        %v999 = vpop.f32.mrf.mxu0
        %v1000 = vadd.f32 0.0, %v999
        %v1001 = vpop.f32.mrf.mxu0
        %v1002 = vadd.f32 0.0, %v1001
        %1003 = vmatmul.bf16.gmra.mxu0 %v305
        %v1004 = vpop.f32.mrf.mxu0
        %v1005 = vadd.f32 0.0, %v1004
        %v1006 = vpop.f32.mrf.mxu0
        %v1007 = vadd.f32 0.0, %v1006
        %1008 = vmatmul.bf16.gmra.mxu0 %v308
        %v1009 = vpop.f32.mrf.mxu0
        %v1010 = vadd.f32 0.0, %v1009
        %v1011 = vpop.f32.mrf.mxu0
        %v1012 = vadd.f32 0.0, %v1011
        %1013 = vmatmul.bf16.gmra.mxu0 %v311
        %v1014 = vpop.f32.mrf.mxu0
        %v1015 = vadd.f32 0.0, %v1014
        %v1016 = vpop.f32.mrf.mxu0
        %v1017 = vadd.f32 0.0, %v1016
        %1018 = vdwg.mxu0
        %v1019 = vmul.f32 %v1000, 2.0
        %v1020 = vmul.f32 %v1002, 2.0
        %v1021 = vmul.f32 %v1005, 2.0
        %v1022 = vmul.f32 %v1007, 2.0
        %v1023 = vmul.f32 %v1010, 2.0
        %v1024 = vmul.f32 %v1012, 2.0
        %v1025 = vmul.f32 %v1015, 2.0
        %v1026 = vmul.f32 %v1017, 2.0
        %v1027 = vsub.f32 %v1019, %v889
        %v1028 = vsub.f32 %v1020, %v890
        %v1029 = vsub.f32 %v1021, %v891
        %v1030 = vsub.f32 %v1022, %v892
        %v1031 = vsub.f32 %v1023, %v893
        %v1032 = vsub.f32 %v1024, %v894
        %v1033 = vsub.f32 %v1025, %v895
        %v1034 = vsub.f32 %v1026, %v896
        %v1035 = vpack.c.bf16 %v1027, %v1027
        %v1036 = vpack.c.bf16 %v1028, %v1028
        %v1037 = vpack.c.bf16 %v1029, %v1029
        %v1038 = vpack.c.bf16 %v1030, %v1030
        %v1039 = vpack.c.bf16 %v1031, %v1031
        %v1040 = vpack.c.bf16 %v1032, %v1032
        %v1041 = vpack.c.bf16 %v1033, %v1033
        %v1042 = vpack.c.bf16 %v1034, %v1034
        %1043 = vrot.lane.b32.xlu0 %v982, 64
        %v1044 = vpop.permute.xlu0 %1043
        %1045 = vrot.lane.b32.xlu0 %v983, 64
        %v1046 = vpop.permute.xlu0 %1045
        %1047 = vrot.lane.b32.xlu0 %v984, 64
        %v1048 = vpop.permute.xlu0 %1047
        %1049 = vrot.lane.b32.xlu0 %v985, 64
        %v1050 = vpop.permute.xlu0 %1049
        %v1059 = vunpack.c.l.b16 %v1035
        %v1060 = vunpack.c.l.b16 %v1036
        %v1061 = vunpack.c.l.b16 %v1037
        %v1062 = vunpack.c.l.b16 %v1038
        %v1063 = vunpack.c.l.b16 %v1039
        %v1064 = vunpack.c.l.b16 %v1040
        %v1065 = vunpack.c.l.b16 %v1041
        %v1066 = vunpack.c.l.b16 %v1042
        %v1067 = vpack.c.b16 %v1060, %v1059
        %v1068 = vpack.c.b16 %v1062, %v1061
        %v1069 = vpack.c.b16 %v1064, %v1063
        %v1070 = vpack.c.b16 %v1066, %v1065
        %v1073 = vsel %vm300, %v921, %v1044
        %v1077 = vsel %vm300, %v922, %v1046
        %v1081 = vsel %vm300, %v923, %v1048
        %v1085 = vsel %vm300, %v924, %v1050
        %s1087 = scalar_lea.vmem %s2, 96
        %v1088 = vld [vmem:[%s1087] sm:$0xf]
        %v1089 = vld [vmem:[%s1087 + $0x4] sm:$0xf]
        %v1090 = vld [vmem:[%s1087 + $0x8] sm:$0xf]
        %v1091 = vld [vmem:[%s1087 + $0xc] sm:$0xf]
        %v1092 = vld [vmem:[%s1087 + $0x10] sm:$0xf]
        %v1093 = vld [vmem:[%s1087 + $0x14] sm:$0xf]
        %v1094 = vld [vmem:[%s1087 + $0x18] sm:$0xf]
        %v1095 = vld [vmem:[%s1087 + $0x1c] sm:$0xf]
        %v1096 = vld [vmem:[%s1087 + $0x20] sm:$0xf]
        %v1097 = vld [vmem:[%s1087 + $0x24] sm:$0xf]
        %v1098 = vld [vmem:[%s1087 + $0x28] sm:$0xf]
        %v1099 = vld [vmem:[%s1087 + $0x2c] sm:$0xf]
        %v1100 = vld [vmem:[%s1087 + $0x30] sm:$0xf]
        %v1101 = vld [vmem:[%s1087 + $0x34] sm:$0xf]
        %v1102 = vld [vmem:[%s1087 + $0x38] sm:$0xf]
        %v1103 = vld [vmem:[%s1087 + $0x3c] sm:$0xf]
        %v1104 = vld [vmem:[%s1087 + $0x40] sm:$0xf]
        %v1105 = vld [vmem:[%s1087 + $0x44] sm:$0xf]
        %v1106 = vld [vmem:[%s1087 + $0x48] sm:$0xf]
        %v1107 = vld [vmem:[%s1087 + $0x4c] sm:$0xf]
        %v1108 = vld [vmem:[%s1087 + $0x50] sm:$0xf]
        %v1109 = vld [vmem:[%s1087 + $0x54] sm:$0xf]
        %v1110 = vld [vmem:[%s1087 + $0x58] sm:$0xf]
        %v1111 = vld [vmem:[%s1087 + $0x5c] sm:$0xf]
        %s1112 = scalar_lea.vmem %s4, 1
        %v1113 = vld [vmem:[%s1112] sm:$0x1]
        %v1115 = vperm.slane %v1113, 0
        %v1141 = vunpack.c.l.b16 %v1088
        %v1142 = vunpack.c.l.b16 %v1089
        %v1143 = vunpack.c.l.b16 %v1090
        %v1144 = vunpack.c.l.b16 %v1091
        %v1145 = vunpack.c.l.b16 %v1092
        %v1146 = vunpack.c.l.b16 %v1093
        %v1147 = vunpack.c.l.b16 %v1094
        %v1148 = vunpack.c.l.b16 %v1095
        %v1149 = vunpack.c.l.b16 %v1096
        %v1150 = vunpack.c.l.b16 %v1097
        %v1151 = vunpack.c.l.b16 %v1098
        %v1152 = vunpack.c.l.b16 %v1099
        %v1153 = vunpack.c.l.b16 %v1100
        %v1154 = vunpack.c.l.b16 %v1101
        %v1155 = vunpack.c.l.b16 %v1102
        %v1156 = vunpack.c.l.b16 %v1103
        %v1157 = vunpack.c.l.b16 %v1104
        %v1158 = vunpack.c.l.b16 %v1105
        %v1159 = vunpack.c.l.b16 %v1106
        %v1160 = vunpack.c.l.b16 %v1107
        %v1161 = vunpack.c.l.b16 %v1108
        %v1162 = vunpack.c.l.b16 %v1109
        %v1163 = vunpack.c.l.b16 %v1110
        %v1164 = vunpack.c.l.b16 %v1111
        %v1165 = vpack.c.b16 %v1142, %v1141
        %v1166 = vpack.c.b16 %v1144, %v1143
        %v1167 = vpack.c.b16 %v1146, %v1145
        %v1168 = vpack.c.b16 %v1148, %v1147
        %v1169 = vpack.c.b16 %v1150, %v1149
        %v1170 = vpack.c.b16 %v1152, %v1151
        %v1171 = vpack.c.b16 %v1154, %v1153
        %v1172 = vpack.c.b16 %v1156, %v1155
        %v1173 = vpack.c.b16 %v1158, %v1157
        %v1174 = vpack.c.b16 %v1160, %v1159
        %v1175 = vpack.c.b16 %v1162, %v1161
        %v1176 = vpack.c.b16 %v1164, %v1163
        %v1190 = vsel %vm300, %v1067, 0
        %v1193 = vsel %vm300, %v1068, 0
        %v1196 = vsel %vm300, %v1069, 0
        %v1199 = vsel %vm300, %v1070, 0
        %1201 = vmatpush.bf16.msra.mxu0 %v1172
        %1202 = vmatpush.bf16.msra.mxu0 %v1171
        %1203 = vmatpush.bf16.msra.mxu0 %v1170
        %1204 = vmatpush.bf16.msra.mxu0 %v1169
        %1205 = vmatpush.bf16.msra.mxu0 %v1168
        %1206 = vmatpush.bf16.msra.mxu0 %v1167
        %1207 = vmatpush.bf16.msra.mxu0 %v1166
        %1208 = vmatpush.bf16.msra.mxu0 %v1165
        %1209 = vmatmul.bf16.gmra.mxu0 %v1073
        %v1210 = vpop.f32.mrf.mxu0
        %v1211 = vadd.f32 %v1115, %v1210
        %v1212 = vpop.f32.mrf.mxu0
        %v1213 = vadd.f32 %v1115, %v1212
        %1214 = vmatmul.bf16.gmra.mxu0 %v1077
        %v1215 = vpop.f32.mrf.mxu0
        %v1216 = vadd.f32 %v1115, %v1215
        %v1217 = vpop.f32.mrf.mxu0
        %v1218 = vadd.f32 %v1115, %v1217
        %1219 = vmatmul.bf16.gmra.mxu0 %v1081
        %v1220 = vpop.f32.mrf.mxu0
        %v1221 = vadd.f32 %v1115, %v1220
        %v1222 = vpop.f32.mrf.mxu0
        %v1223 = vadd.f32 %v1115, %v1222
        %1224 = vmatmul.bf16.gmra.mxu0 %v1085
        %v1225 = vpop.f32.mrf.mxu0
        %v1226 = vadd.f32 %v1115, %v1225
        %v1227 = vpop.f32.mrf.mxu0
        %v1228 = vadd.f32 %v1115, %v1227
        %1229 = vdwg.mxu0
        %1230 = vmatpush.bf16.msra.mxu0 0
        %1231 = vmatpush.bf16.msra.mxu0 0
        %1232 = vmatpush.bf16.msra.mxu0 0
        %1233 = vmatpush.bf16.msra.mxu0 0
        %1234 = vmatpush.bf16.msra.mxu0 %v1176
        %1235 = vmatpush.bf16.msra.mxu0 %v1175
        %1236 = vmatpush.bf16.msra.mxu0 %v1174
        %1237 = vmatpush.bf16.msra.mxu0 %v1173
        %1238 = vmatmul.bf16.gmra.mxu0 %v1190
        %v1239 = vpop.f32.mrf.mxu0
        %v1240 = vadd.f32 %v1211, %v1239
        %v1241 = vpop.f32.mrf.mxu0
        %v1242 = vadd.f32 %v1213, %v1241
        %1243 = vmatmul.bf16.gmra.mxu0 %v1193
        %v1244 = vpop.f32.mrf.mxu0
        %v1245 = vadd.f32 %v1216, %v1244
        %v1246 = vpop.f32.mrf.mxu0
        %v1247 = vadd.f32 %v1218, %v1246
        %1248 = vmatmul.bf16.gmra.mxu0 %v1196
        %v1249 = vpop.f32.mrf.mxu0
        %v1250 = vadd.f32 %v1221, %v1249
        %v1251 = vpop.f32.mrf.mxu0
        %v1252 = vadd.f32 %v1223, %v1251
        %1253 = vmatmul.bf16.gmra.mxu0 %v1199
        %v1254 = vpop.f32.mrf.mxu0
        %v1255 = vadd.f32 %v1226, %v1254
        %v1256 = vpop.f32.mrf.mxu0
        %v1257 = vadd.f32 %v1228, %v1256
        %1258 = vdwg.mxu0
        %v1259 = vxor.u32 %v1240, 2147483648
        %v1260 = vxor.u32 %v1242, 2147483648
        %v1261 = vxor.u32 %v1245, 2147483648
        %v1262 = vxor.u32 %v1247, 2147483648
        %v1263 = vxor.u32 %v1250, 2147483648
        %v1264 = vxor.u32 %v1252, 2147483648
        %v1265 = vxor.u32 %v1255, 2147483648
        %v1266 = vxor.u32 %v1257, 2147483648
        %v1267 = vmul.f32 %v1259, 1.442695
        %v1268 = vpow.pop %v1267
        %v1269 = vmul.f32 %v1260, 1.442695
        %v1270 = vpow.pop %v1269
        %v1271 = vmul.f32 %v1261, 1.442695
        %v1272 = vpow.pop %v1271
        %v1273 = vmul.f32 %v1262, 1.442695
        %v1274 = vpow.pop %v1273
        %v1275 = vmul.f32 %v1263, 1.442695
        %v1276 = vpow.pop %v1275
        %v1277 = vmul.f32 %v1264, 1.442695
        %v1278 = vpow.pop %v1277
        %v1279 = vmul.f32 %v1265, 1.442695
        %v1280 = vpow.pop %v1279
        %v1281 = vmul.f32 %v1266, 1.442695
        %v1282 = vpow.pop %v1281
        %v1283 = vadd.f32 %v1268, 1.0
        %v1284 = vadd.f32 %v1270, 1.0
        %v1285 = vadd.f32 %v1272, 1.0
        %v1286 = vadd.f32 %v1274, 1.0
        %v1287 = vadd.f32 %v1276, 1.0
        %v1288 = vadd.f32 %v1278, 1.0
        %v1289 = vadd.f32 %v1280, 1.0
        %v1290 = vadd.f32 %v1282, 1.0
        %v1291 = vrcp.pop %v1283
        %v1292 = vmul.f32 %v1283, %v1291
        %v1293 = vsub.f32 1.0, %v1292
        %v1294 = vmul.f32 %v1291, %v1293
        %v1295 = vadd.f32 %v1291, %v1294
        %vm1296 = vweird.f32 %v1283
        %vm1297 = vweird.f32 %v1291
        %vm1298 = vmor %vm1296, %vm1297
        %v1299 = vsel %vm1298, %v1291, %v1295
        %v1300 = vand.u32 2147483647, %v1283
        %vm1301 = vcmp.eq.f32.partialorder %v1300, 8.507059e+37
        %v1302 = vand.u32 %v1283, 2147483648
        %v1303 = vor.u32 1.1754944e-38, %v1302
        %v1304 = vsel %vm1301, %v1303, %v1299
        %v1305 = vmul.f32 1.0, %v1304
        %v1306 = vrcp.pop %v1284
        %v1307 = vmul.f32 %v1284, %v1306
        %v1308 = vsub.f32 1.0, %v1307
        %v1309 = vmul.f32 %v1306, %v1308
        %v1310 = vadd.f32 %v1306, %v1309
        %vm1311 = vweird.f32 %v1284
        %vm1312 = vweird.f32 %v1306
        %vm1313 = vmor %vm1311, %vm1312
        %v1314 = vsel %vm1313, %v1306, %v1310
        %v1315 = vand.u32 2147483647, %v1284
        %vm1316 = vcmp.eq.f32.partialorder %v1315, 8.507059e+37
        %v1317 = vand.u32 %v1284, 2147483648
        %v1318 = vor.u32 1.1754944e-38, %v1317
        %v1319 = vsel %vm1316, %v1318, %v1314
        %v1320 = vmul.f32 1.0, %v1319
        %v1321 = vrcp.pop %v1285
        %v1322 = vmul.f32 %v1285, %v1321
        %v1323 = vsub.f32 1.0, %v1322
        %v1324 = vmul.f32 %v1321, %v1323
        %v1325 = vadd.f32 %v1321, %v1324
        %vm1326 = vweird.f32 %v1285
        %vm1327 = vweird.f32 %v1321
        %vm1328 = vmor %vm1326, %vm1327
        %v1329 = vsel %vm1328, %v1321, %v1325
        %v1330 = vand.u32 2147483647, %v1285
        %vm1331 = vcmp.eq.f32.partialorder %v1330, 8.507059e+37
        %v1332 = vand.u32 %v1285, 2147483648
        %v1333 = vor.u32 1.1754944e-38, %v1332
        %v1334 = vsel %vm1331, %v1333, %v1329
        %v1335 = vmul.f32 1.0, %v1334
        %v1336 = vrcp.pop %v1286
        %v1337 = vmul.f32 %v1286, %v1336
        %v1338 = vsub.f32 1.0, %v1337
        %v1339 = vmul.f32 %v1336, %v1338
        %v1340 = vadd.f32 %v1336, %v1339
        %vm1341 = vweird.f32 %v1286
        %vm1342 = vweird.f32 %v1336
        %vm1343 = vmor %vm1341, %vm1342
        %v1344 = vsel %vm1343, %v1336, %v1340
        %v1345 = vand.u32 2147483647, %v1286
        %vm1346 = vcmp.eq.f32.partialorder %v1345, 8.507059e+37
        %v1347 = vand.u32 %v1286, 2147483648
        %v1348 = vor.u32 1.1754944e-38, %v1347
        %v1349 = vsel %vm1346, %v1348, %v1344
        %v1350 = vmul.f32 1.0, %v1349
        %v1351 = vrcp.pop %v1287
        %v1352 = vmul.f32 %v1287, %v1351
        %v1353 = vsub.f32 1.0, %v1352
        %v1354 = vmul.f32 %v1351, %v1353
        %v1355 = vadd.f32 %v1351, %v1354
        %vm1356 = vweird.f32 %v1287
        %vm1357 = vweird.f32 %v1351
        %vm1358 = vmor %vm1356, %vm1357
        %v1359 = vsel %vm1358, %v1351, %v1355
        %v1360 = vand.u32 2147483647, %v1287
        %vm1361 = vcmp.eq.f32.partialorder %v1360, 8.507059e+37
        %v1362 = vand.u32 %v1287, 2147483648
        %v1363 = vor.u32 1.1754944e-38, %v1362
        %v1364 = vsel %vm1361, %v1363, %v1359
        %v1365 = vmul.f32 1.0, %v1364
        %v1366 = vrcp.pop %v1288
        %v1367 = vmul.f32 %v1288, %v1366
        %v1368 = vsub.f32 1.0, %v1367
        %v1369 = vmul.f32 %v1366, %v1368
        %v1370 = vadd.f32 %v1366, %v1369
        %vm1371 = vweird.f32 %v1288
        %vm1372 = vweird.f32 %v1366
        %vm1373 = vmor %vm1371, %vm1372
        %v1374 = vsel %vm1373, %v1366, %v1370
        %v1375 = vand.u32 2147483647, %v1288
        %vm1376 = vcmp.eq.f32.partialorder %v1375, 8.507059e+37
        %v1377 = vand.u32 %v1288, 2147483648
        %v1378 = vor.u32 1.1754944e-38, %v1377
        %v1379 = vsel %vm1376, %v1378, %v1374
        %v1380 = vmul.f32 1.0, %v1379
        %v1381 = vrcp.pop %v1289
        %v1382 = vmul.f32 %v1289, %v1381
        %v1383 = vsub.f32 1.0, %v1382
        %v1384 = vmul.f32 %v1381, %v1383
        %v1385 = vadd.f32 %v1381, %v1384
        %vm1386 = vweird.f32 %v1289
        %vm1387 = vweird.f32 %v1381
        %vm1388 = vmor %vm1386, %vm1387
        %v1389 = vsel %vm1388, %v1381, %v1385
        %v1390 = vand.u32 2147483647, %v1289
        %vm1391 = vcmp.eq.f32.partialorder %v1390, 8.507059e+37
        %v1392 = vand.u32 %v1289, 2147483648
        %v1393 = vor.u32 1.1754944e-38, %v1392
        %v1394 = vsel %vm1391, %v1393, %v1389
        %v1395 = vmul.f32 1.0, %v1394
        %v1396 = vrcp.pop %v1290
        %v1397 = vmul.f32 %v1290, %v1396
        %v1398 = vsub.f32 1.0, %v1397
        %v1399 = vmul.f32 %v1396, %v1398
        %v1400 = vadd.f32 %v1396, %v1399
        %vm1401 = vweird.f32 %v1290
        %vm1402 = vweird.f32 %v1396
        %vm1403 = vmor %vm1401, %vm1402
        %v1404 = vsel %vm1403, %v1396, %v1400
        %v1405 = vand.u32 2147483647, %v1290
        %vm1406 = vcmp.eq.f32.partialorder %v1405, 8.507059e+37
        %v1407 = vand.u32 %v1290, 2147483648
        %v1408 = vor.u32 1.1754944e-38, %v1407
        %v1409 = vsel %vm1406, %v1408, %v1404
        %v1410 = vmul.f32 1.0, %v1409
        %v1411 = vtanh.pop %v1240
        %v1412 = vtanh.pop %v1242
        %v1413 = vtanh.pop %v1245
        %v1414 = vtanh.pop %v1247
        %v1415 = vtanh.pop %v1250
        %v1416 = vtanh.pop %v1252
        %v1417 = vtanh.pop %v1255
        %v1418 = vtanh.pop %v1257
        %v1419 = vsub.f32 1.0, %v1305
        %v1420 = vsub.f32 1.0, %v1320
        %v1421 = vsub.f32 1.0, %v1335
        %v1422 = vsub.f32 1.0, %v1350
        %v1423 = vsub.f32 1.0, %v1365
        %v1424 = vsub.f32 1.0, %v1380
        %v1425 = vsub.f32 1.0, %v1395
        %v1426 = vsub.f32 1.0, %v1410
        %1435 = vrot.lane.b32.xlu0 %v1411, 96
        %v1436 = vpop.permute.xlu0 %1435
        %1437 = vrot.lane.b32.xlu0 %v1412, 96
        %v1438 = vpop.permute.xlu0 %1437
        %1439 = vrot.lane.b32.xlu0 %v1413, 96
        %v1440 = vpop.permute.xlu0 %1439
        %1441 = vrot.lane.b32.xlu0 %v1414, 96
        %v1442 = vpop.permute.xlu0 %1441
        %1443 = vrot.lane.b32.xlu0 %v1415, 96
        %v1444 = vpop.permute.xlu0 %1443
        %1445 = vrot.lane.b32.xlu0 %v1416, 96
        %v1446 = vpop.permute.xlu0 %1445
        %1447 = vrot.lane.b32.xlu0 %v1417, 96
        %v1448 = vpop.permute.xlu0 %1447
        %1449 = vrot.lane.b32.xlu0 %v1418, 96
        %v1450 = vpop.permute.xlu0 %1449
        %v1459 = vmul.f32 %v1419, %v1436
        %v1460 = vmul.f32 %v1420, %v1438
        %v1461 = vmul.f32 %v1421, %v1440
        %v1462 = vmul.f32 %v1422, %v1442
        %v1463 = vmul.f32 %v1423, %v1444
        %v1464 = vmul.f32 %v1424, %v1446
        %v1465 = vmul.f32 %v1425, %v1448
        %v1466 = vmul.f32 %v1426, %v1450
        %1475 = vrot.lane.b32.xlu0 %v1459, 96
        %v1476 = vpop.permute.xlu0 %1475
        %1477 = vrot.lane.b32.xlu0 %v1460, 96
        %v1478 = vpop.permute.xlu0 %1477
        %1479 = vrot.lane.b32.xlu0 %v1461, 96
        %v1480 = vpop.permute.xlu0 %1479
        %1481 = vrot.lane.b32.xlu0 %v1462, 96
        %v1482 = vpop.permute.xlu0 %1481
        %1483 = vrot.lane.b32.xlu0 %v1463, 96
        %v1484 = vpop.permute.xlu0 %1483
        %1485 = vrot.lane.b32.xlu0 %v1464, 96
        %v1486 = vpop.permute.xlu0 %1485
        %1487 = vrot.lane.b32.xlu0 %v1465, 96
        %v1488 = vpop.permute.xlu0 %1487
        %1489 = vrot.lane.b32.xlu0 %v1466, 96
        %v1490 = vpop.permute.xlu0 %1489
        %s1499 = scalar_lea.vmem %s214, 64 [#allocation2]
        %1500 = vst.msk [vmem:[%s1499] sm:$0xff] %vm239, %v1476
        %1501 = vst.msk [vmem:[%s1499 + $0x8] sm:$0xff] %vm239, %v1478
        %1502 = vst.msk [vmem:[%s1499 + $0x10] sm:$0xff] %vm239, %v1480
        %1503 = vst.msk [vmem:[%s1499 + $0x18] sm:$0xff] %vm239, %v1482
        %1504 = vst.msk [vmem:[%s1499 + $0x20] sm:$0xff] %vm239, %v1484
        %1505 = vst.msk [vmem:[%s1499 + $0x28] sm:$0xff] %vm239, %v1486
        %1506 = vst.msk [vmem:[%s1499 + $0x30] sm:$0xff] %vm239, %v1488
        %1507 = vst.msk [vmem:[%s1499 + $0x38] sm:$0xff] %vm239, %v1490
        %s1508 = sand.u32 %s134, 1
        %s1509 = sand.u32 %s134, 1
        %s1510 = smul.addr %s1509, 128
        %s1511 = scalar_lea.vmem [#allocation2], %s1510
        // Predicated region
        $region41: #{tpu_custom_call.1} parent=39 // pred_check
          %p1512 = pneg %p144
        $region42: #{tpu_custom_call.1} parent=39 // pred_check_branch
          %1514 = sbr.rel (%p1512) target = $region44
        $region43: #{tpu_custom_call.1} parent=39 // pred_region
          %s1515 = smul.u32 8, %s16
          %s1516 = smul.addr %s1515, 8
          %s1517 = scalar_lea.vmem %s5, %s1516
          // Predicated region
          $region45: #{tpu_custom_call.1} parent=43 // pred_check
            _
          $region46: #{tpu_custom_call.1} parent=43 // pred_check_branch
            %1519 = sbr.rel (0) target = $region48
          $region47: #{tpu_custom_call.1} parent=43 // pred_region
            // Predicated region
            $region49: #{tpu_custom_call.1} parent=47 // pred_check
              _
            $region50: #{tpu_custom_call.1} parent=47 // pred_check_branch
              %1521 = sbr.rel (0) target = $region52
            $region51: #{tpu_custom_call.1} parent=47 // pred_region
              // Predicated region
              $region64: #{tpu_custom_call.1} parent=51 // pred_check
                _
              $region65: #{tpu_custom_call.1} parent=51 // pred_check_branch
                %1567 = sbr.rel (0) target = $region67
              $region66: #{tpu_custom_call.1} parent=51 // pred_region
                loop: start=0, step=1, limit=1
                $region68: #{tpu_custom_call.1} parent=66 // loop_pre_header
                  _
                $region69: #{tpu_custom_call.1} parent=66 // loop_header
                  %s1569 = sphi 0, %s1573
                  %p1570 = scmp.ge.s32.totalorder %s1569, 1
                  %s1574 = sphi %s1511, %s1511
                  %s1575 = sphi %s1517, %s1517
                $region70: #{tpu_custom_call.1} parent=66 // loop_header_branch
                  %1572 = sbr.rel (%p1570) target = $region74
                $region71: #{tpu_custom_call.1} parent=66 // loop_body
                  %v1576 = vld [vmem:[%s1574] sm:$0xff]
                  %1577 = vst [vmem:[%s1575] sm:$0xff] %v1576
                  %v1578 = vld [vmem:[%s1574 + $0x8] sm:$0xff]
                  %1579 = vst [vmem:[%s1575 + $0x8] sm:$0xff] %v1578
                  %v1580 = vld [vmem:[%s1574 + $0x10] sm:$0xff]
                  %1581 = vst [vmem:[%s1575 + $0x10] sm:$0xff] %v1580
                  %v1582 = vld [vmem:[%s1574 + $0x18] sm:$0xff]
                  %1583 = vst [vmem:[%s1575 + $0x18] sm:$0xff] %v1582
                  %v1584 = vld [vmem:[%s1574 + $0x20] sm:$0xff]
                  %1585 = vst [vmem:[%s1575 + $0x20] sm:$0xff] %v1584
                  %v1586 = vld [vmem:[%s1574 + $0x28] sm:$0xff]
                  %1587 = vst [vmem:[%s1575 + $0x28] sm:$0xff] %v1586
                  %v1588 = vld [vmem:[%s1574 + $0x30] sm:$0xff]
                  %1589 = vst [vmem:[%s1575 + $0x30] sm:$0xff] %v1588
                  %v1590 = vld [vmem:[%s1574 + $0x38] sm:$0xff]
                  %1591 = vst [vmem:[%s1575 + $0x38] sm:$0xff] %v1590
                  %v1592 = vld [vmem:[%s1574 + $0x40] sm:$0xff]
                  %1593 = vst [vmem:[%s1575 + $0x80] sm:$0xff] %v1592
                  %v1594 = vld [vmem:[%s1574 + $0x48] sm:$0xff]
                  %1595 = vst [vmem:[%s1575 + $0x88] sm:$0xff] %v1594
                  %v1596 = vld [vmem:[%s1574 + $0x50] sm:$0xff]
                  %1597 = vst [vmem:[%s1575 + $0x90] sm:$0xff] %v1596
                  %v1598 = vld [vmem:[%s1574 + $0x58] sm:$0xff]
                  %1599 = vst [vmem:[%s1575 + $0x98] sm:$0xff] %v1598
                  %v1600 = vld [vmem:[%s1574 + $0x60] sm:$0xff]
                  %1601 = vst [vmem:[%s1575 + $0xa0] sm:$0xff] %v1600
                  %v1602 = vld [vmem:[%s1574 + $0x68] sm:$0xff]
                  %1603 = vst [vmem:[%s1575 + $0xa8] sm:$0xff] %v1602
                  %v1604 = vld [vmem:[%s1574 + $0x70] sm:$0xff]
                  %1605 = vst [vmem:[%s1575 + $0xb0] sm:$0xff] %v1604
                  %v1606 = vld [vmem:[%s1574 + $0x78] sm:$0xff]
                  %1607 = vst [vmem:[%s1575 + $0xb8] sm:$0xff] %v1606
                $region72: #{tpu_custom_call.1} parent=66 // loop_footer
                  %s1573 = sadd.s32 1, %s1569
                $region73: #{tpu_custom_call.1} parent=66 // loop_footer_branch
                  %1568 = sbr.rel target = $region69
                $region74: #{tpu_custom_call.1} parent=66 // loop_exit
                  _
              $region67: #{tpu_custom_call.1} parent=51 // pred_fallthru
                _
              // Predicated region
              $region75: #{tpu_custom_call.1} parent=51 // pred_check
                _
              $region76: #{tpu_custom_call.1} parent=51 // pred_check_branch
                %1609 = sbr.rel target = $region78
              $region77: #{tpu_custom_call.1} parent=51 // pred_region
                _
              $region78: #{tpu_custom_call.1} parent=51 // pred_fallthru
                _
            $region52: #{tpu_custom_call.1} parent=47 // pred_fallthru
              _
            // Predicated region
            $region53: #{tpu_custom_call.1} parent=47 // pred_check
              _
            $region54: #{tpu_custom_call.1} parent=47 // pred_check_branch
              %1523 = sbr.rel target = $region56
            $region55: #{tpu_custom_call.1} parent=47 // pred_region
              %s1525 = ssub.s32 256, 1
              loop: start=0, step=1, limit=1
              $region57: #{tpu_custom_call.1} parent=55 // loop_pre_header
                _
              $region58: #{tpu_custom_call.1} parent=55 // loop_header
                %s1527 = sphi 0, %s1531
                %p1528 = scmp.ge.s32.totalorder %s1527, 1
                %s1532 = sphi %s1511, %s1511
                %s1533 = sphi %s1517, %s1517
              $region59: #{tpu_custom_call.1} parent=55 // loop_header_branch
                %1530 = sbr.rel (%p1528) target = $region63
              $region60: #{tpu_custom_call.1} parent=55 // loop_body
                %v1534 = vld [vmem:[%s1532] sm:%s1525]
                %1535 = vst [vmem:[%s1533] sm:%s1525] %v1534
                %v1536 = vld [vmem:[%s1532 + $0x8] sm:%s1525]
                %1537 = vst [vmem:[%s1533 + $0x8] sm:%s1525] %v1536
                %v1538 = vld [vmem:[%s1532 + $0x10] sm:%s1525]
                %1539 = vst [vmem:[%s1533 + $0x10] sm:%s1525] %v1538
                %v1540 = vld [vmem:[%s1532 + $0x18] sm:%s1525]
                %1541 = vst [vmem:[%s1533 + $0x18] sm:%s1525] %v1540
                %v1542 = vld [vmem:[%s1532 + $0x20] sm:%s1525]
                %1543 = vst [vmem:[%s1533 + $0x20] sm:%s1525] %v1542
                %v1544 = vld [vmem:[%s1532 + $0x28] sm:%s1525]
                %1545 = vst [vmem:[%s1533 + $0x28] sm:%s1525] %v1544
                %v1546 = vld [vmem:[%s1532 + $0x30] sm:%s1525]
                %1547 = vst [vmem:[%s1533 + $0x30] sm:%s1525] %v1546
                %v1548 = vld [vmem:[%s1532 + $0x38] sm:%s1525]
                %1549 = vst [vmem:[%s1533 + $0x38] sm:%s1525] %v1548
                %v1550 = vld [vmem:[%s1532 + $0x40] sm:%s1525]
                %1551 = vst [vmem:[%s1533 + $0x80] sm:%s1525] %v1550
                %v1552 = vld [vmem:[%s1532 + $0x48] sm:%s1525]
                %1553 = vst [vmem:[%s1533 + $0x88] sm:%s1525] %v1552
                %v1554 = vld [vmem:[%s1532 + $0x50] sm:%s1525]
                %1555 = vst [vmem:[%s1533 + $0x90] sm:%s1525] %v1554
                %v1556 = vld [vmem:[%s1532 + $0x58] sm:%s1525]
                %1557 = vst [vmem:[%s1533 + $0x98] sm:%s1525] %v1556
                %v1558 = vld [vmem:[%s1532 + $0x60] sm:%s1525]
                %1559 = vst [vmem:[%s1533 + $0xa0] sm:%s1525] %v1558
                %v1560 = vld [vmem:[%s1532 + $0x68] sm:%s1525]
                %1561 = vst [vmem:[%s1533 + $0xa8] sm:%s1525] %v1560
                %v1562 = vld [vmem:[%s1532 + $0x70] sm:%s1525]
                %1563 = vst [vmem:[%s1533 + $0xb0] sm:%s1525] %v1562
                %v1564 = vld [vmem:[%s1532 + $0x78] sm:%s1525]
                %1565 = vst [vmem:[%s1533 + $0xb8] sm:%s1525] %v1564
              $region61: #{tpu_custom_call.1} parent=55 // loop_footer
                %s1531 = sadd.s32 1, %s1527
              $region62: #{tpu_custom_call.1} parent=55 // loop_footer_branch
                %1526 = sbr.rel target = $region58
              $region63: #{tpu_custom_call.1} parent=55 // loop_exit
                _
            $region56: #{tpu_custom_call.1} parent=47 // pred_fallthru
              _
          $region48: #{tpu_custom_call.1} parent=43 // pred_fallthru
            _
          %1610 = vnop
        $region44: #{tpu_custom_call.1} parent=39 // pred_fallthru
          _
      $region40: #{tpu_custom_call.1} parent=5 // pred_fallthru
        _
      %p1611 = scmp.le.s32.totalorder 2, %s11
      // Predicated region
      $region79: #{tpu_custom_call.1} parent=5 // pred_check
        %p1612 = pneg %p1611
      $region80: #{tpu_custom_call.1} parent=5 // pred_check_branch
        %1614 = sbr.rel (%p1612) target = $region82
      $region81: #{tpu_custom_call.1} parent=5 // pred_region
        %s1615 = ssub.s32 %s11, 2
        // Predicated region
        $region83: #{tpu_custom_call.1} parent=81 // pred_check
          %p1616 = pneg %p150
        $region84: #{tpu_custom_call.1} parent=81 // pred_check_branch
          %1618 = sbr.rel (%p1616) target = $region86
        $region85: #{tpu_custom_call.1} parent=81 // pred_region
          %s1619 = sand.u32 %s135, 1
          %s1620 = sand.u32 %s135, 1
          %s1621 = smul.addr %s1620, 128
          %s1622 = scalar_lea.vmem [#allocation2], %s1621
        $region86: #{tpu_custom_call.1} parent=81 // pred_fallthru
          _
      $region82: #{tpu_custom_call.1} parent=5 // pred_fallthru
        _
    $region6: #{tpu_custom_call.1} parent=1 // loop_footer
      %s15 = sadd.s32 1, %s11
    $region7: #{tpu_custom_call.1} parent=1 // loop_footer_branch
      %10 = sbr.rel target = $region3
    $region8: #{tpu_custom_call.1} parent=1 // loop_exit
      _

</llo_original>
